<compile_context>
chip_gen: v6e
topology: v6e:2x2x1
jax: 0.10.0
libtpu: 0.0.40
codegen_flags: <defaults>
</compile_context>

<pallas_src>
import functools
import math

import jax
import jax.numpy as jnp
import numpy as np
from jax.experimental import pallas as pl
from jax.experimental.pallas import tpu as pltpu

# ---------------- model config (small, consistent with ModelArgs) ----------------
DIM = 64            # args.dim
N_HEADS = 4         # args.n_heads
HEAD_DIM = DIM // N_HEADS
MULTIPLE_OF = 32    # args.multiple_of
NORM_EPS = 1e-5     # args.norm_eps
BATCH = 2
SEQ = 8
START_POS = 0

# FeedForward hidden dim, exactly as in the module __init__
_hidden = 4 * DIM
_hidden = int(2 * _hidden / 3)
HIDDEN = MULTIPLE_OF * ((_hidden + MULTIPLE_OF - 1) // MULTIPLE_OF)   # -> 192


# ================================ fused kernel ================================
def encoder_block_kernel(x_ref, wqkv_ref, wo_ref, w13_ref, w2_ref, consts_ref, o_ref,
                         *, B, S, H, D, hidden, eps):
    """out = h + FFN(RMSNorm(h)),  h = x + Attn(RMSNorm(x));  all refs in VMEM."""
    f32 = jnp.float32
    BS = B * S
    dim = H * D

    x = x_ref[...]                                        # (BS, dim) f32

    # constants slab (host-precomputed, one DMA):
    #   rows [0,BS)      cos table      (BS, dim)
    #   rows [BS,2BS)    sin table      (BS, dim)
    #   rows [2BS,3BS)   batch bias     (BS, BS)  in cols [0,BS)
    #   rows [3BS,3BS+H) per-head masks (H,  dim)
    c = consts_ref[...]
    cos = c[0:BS, :]
    sin = c[BS:2 * BS, :]
    bias = c[2 * BS:3 * BS, 0:BS]

    # --- RMSNorm(x); learned norm weight is pre-folded into wqkv rows ---
    xr = x * jax.lax.rsqrt(jnp.mean(x * x, axis=-1, keepdims=True) + eps)

    # --- fused QKV (+ pre-rotated Q/K) projection: one MXU matmul ---
    qkv = jnp.dot(xr, wqkv_ref[...], preferred_element_type=f32)   # (BS, 5*dim)
    q = qkv[:, 0:dim]                 # 1/sqrt(head_dim) already folded into Wq
    qr = qkv[:, dim:2 * dim]          # q @ R (rotation folded into weights)
    k = qkv[:, 2 * dim:3 * dim]
    kr = qkv[:, 3 * dim:4 * dim]
    v = qkv[:, 4 * dim:5 * dim]

    # --- rotary embedding: x*cos + (x@R)*sin, with x@R from the fused matmul ---
    q = q * cos + qr * sin
    k = k * cos + kr * sin

    # --- attention over all (batch, head) pairs via per-head lane masks ---
    dn_qkT = (((1,), (1,)), ((), ()))          # q @ k.T without materializing k.T
    attn = jnp.zeros_like(x)                   # (BS, dim) accumulator
    for h in range(H):
        m = c[3 * BS + h:3 * BS + h + 1, :]    # (1, dim) lane mask for head h
        s = jax.lax.dot_general(q * m, k, dn_qkT, preferred_element_type=f32) + bias
        mx = jnp.max(s, axis=-1, keepdims=True)
        e = jnp.exp(s - mx)
        p = e * pl.reciprocal(jnp.sum(e, axis=-1, keepdims=True), approx=False)
        attn = attn + jnp.dot(p, v * m, preferred_element_type=f32)

    # --- output projection + residual ---
    h_res = x + jnp.dot(attn, wo_ref[...], preferred_element_type=f32)

    # --- RMSNorm(h); learned norm weight pre-folded into w13 rows ---
    hr = h_res * jax.lax.rsqrt(jnp.mean(h_res * h_res, axis=-1, keepdims=True) + eps)

    # --- SwiGLU FFN (fused w1|w3 matmul) + residual ---
    ag = jnp.dot(hr, w13_ref[...], preferred_element_type=f32)     # (BS, 2*hidden)
    a = ag[:, 0:hidden]
    g = ag[:, hidden:2 * hidden]
    swish = a * pl.reciprocal(1.0 + jnp.exp(-a), approx=False)     # SiLU via EUP
    o_ref[...] = h_res + jnp.dot(swish * g, w2_ref[...], preferred_element_type=f32)


# ================================ wrapper ================================
def _vmem_spec():
    return pl.BlockSpec(memory_space=pltpu.MemorySpace.VMEM)


def make_rot_matrix(dim):
    # rot(x)[2i] = -x[2i+1], rot(x)[2i+1] = x[2i]   (rot = x @ R)
    R = np.zeros((dim, dim), np.float32)
    for j in range(dim // 2):
        R[2 * j + 1, 2 * j] = -1.0
        R[2 * j, 2 * j + 1] = 1.0
    return R


def prepare_params(params):
    """One-time weight prep (host side, off the per-call critical path):
       * pre-transpose linears to (in, out),
       * fold attention/ffn RMSNorm weights into the weight rows,
       * fold 1/sqrt(head_dim) into Wq,
       * pre-apply the RoPE rotation matrix to Wq/Wk,
       * concatenate into fused slabs wqkv (dim, 5*dim) and w13 (dim, 2*hidden)."""
    R = make_rot_matrix(DIM)
    nw_a = np.asarray(params["attn_norm_w"], np.float32).reshape(DIM, 1)
    nw_f = np.asarray(params["ffn_norm_w"], np.float32).reshape(DIM, 1)
    inv_sqrt_d = 1.0 / math.sqrt(HEAD_DIM)

    wq_t = np.asarray(params["wq"], np.float32).T * nw_a * inv_sqrt_d   # (dim, dim)
    wk_t = np.asarray(params["wk"], np.float32).T * nw_a
    wv_t = np.asarray(params["wv"], np.float32).T * nw_a
    wqkv = np.concatenate([wq_t, wq_t @ R, wk_t, wk_t @ R, wv_t], axis=1)  # (dim, 5*dim)

    wo_t = np.asarray(params["wo"], np.float32).T                        # (dim, dim)
    w1_t = np.asarray(params["w1"], np.float32).T * nw_f                 # (dim, hidden)
    w3_t = np.asarray(params["w3"], np.float32).T * nw_f
    w13 = np.concatenate([w1_t, w3_t], axis=1)                           # (dim, 2*hidden)
    w2_t = np.asarray(params["w2"], np.float32).T                        # (hidden, dim)

    return {
        "wqkv": jnp.asarray(wqkv, jnp.float32),
        "wo": jnp.asarray(wo_t, jnp.float32),
        "w13": jnp.asarray(w13, jnp.float32),
        "w2": jnp.asarray(w2_t, jnp.float32),
    }


def make_consts(B, S, H, D, start_pos=START_POS):
    """Host-precomputed constants slab: RoPE cos/sin tables, block-diagonal batch
    bias, per-head lane masks.  Packed into one (3*BS + 8, dim) f32 array so the
    kernel takes a single extra DMA instead of four."""
    dim = H * D
    BS = B * S

    theta = 1.0 / (10000.0 ** (np.arange(0, D, 2, dtype=np.float64) / D))
    pos = np.arange(start_pos, start_pos + S, dtype=np.float64)
    ang = np.outer(pos, theta)                                     # (S, D/2)
    cos_h = np.cos(ang).astype(np.float32)
    sin_h = np.sin(ang).astype(np.float32)
    cos_full = np.tile(np.repeat(cos_h, 2, axis=-1), (1, H))       # (S, dim)
    sin_full = np.tile(np.repeat(sin_h, 2, axis=-1), (1, H))
    cos2d = np.tile(cos_full, (B, 1)).astype(np.float32)           # (BS, dim)
    sin2d = np.tile(sin_full, (B, 1)).astype(np.float32)

    row_b = np.arange(BS)[:, None] // S
    col_b = np.arange(BS)[None, :] // S
    bias = np.where(row_b == col_b, 0.0, -1e30).astype(np.float32)  # (BS, BS)
    bias_pad = np.zeros((BS, dim), np.float32)
    bias_pad[:, :BS] = bias

    lane = np.arange(dim)
    masks = (lane[None, :] // D == np.arange(H)[:, None]).astype(np.float32)  # (H, dim)
    mrows = ((H + 7) // 8) * 8
    masks_pad = np.zeros((mrows, dim), np.float32)
    masks_pad[:H] = masks

    consts = np.concatenate([cos2d, sin2d, bias_pad, masks_pad], axis=0)
    return jnp.asarray(consts), jnp.asarray(cos_h), jnp.asarray(sin_h)


@jax.jit
def encoder_block_forward(x, prep, consts):
    """x: (B, S, dim) float32 -> (B, S, dim) float32.  Single fused pallas_call."""
    B, S, dim = x.shape
    x2 = x.reshape(B * S, dim)

    kernel = functools.partial(
        encoder_block_kernel, B=B, S=S, H=N_HEADS, D=HEAD_DIM,
        hidden=HIDDEN, eps=NORM_EPS)

    out2 = pl.pallas_call(
        kernel,
        out_shape=jax.ShapeDtypeStruct((B * S, dim), jnp.float32),
        in_specs=[_vmem_spec()] * 6,
        out_specs=_vmem_spec(),
    )(x2, prep["wqkv"], prep["wo"], prep["w13"], prep["w2"], consts)

    return out2.reshape(B, S, dim)


# ======================= pure-JAX reference (torch semantics) =======================
def ref_forward(x, params, cos_half, sin_half):
    B, S, dim = x.shape
    H, D = N_HEADS, HEAD_DIM

    def rmsnorm(v, w):
        return w * (v * jax.lax.rsqrt(jnp.mean(v * v, -1, keepdims=True) + NORM_EPS))

    def rope(v):  # v: (B,S,H,D)
        vr = v.reshape(B, S, H, D // 2, 2)
        xr, xi = vr[..., 0], vr[..., 1]
        c = cos_half[None, :, None, :]
        s = sin_half[None, :, None, :]
        out = jnp.stack([xr * c - xi * s, xr * s + xi * c], axis=-1)
        return out.reshape(B, S, H, D)

    xn = rmsnorm(x, params["attn_norm_w"])
    q = (xn @ params["wq"].T).reshape(B, S, H, D)
    k = (xn @ params["wk"].T).reshape(B, S, H, D)
    v = (xn @ params["wv"].T).reshape(B, S, H, D)
    q, k = rope(q), rope(k)
    qt = q.transpose(0, 2, 1, 3)
    kt = k.transpose(0, 2, 1, 3)
    vt = v.transpose(0, 2, 1, 3)
    scores = jnp.einsum("bhqd,bhkd->bhqk", qt, kt) / math.sqrt(D)
    p = jax.nn.softmax(scores, axis=-1)
    o = jnp.einsum("bhqk,bhkd->bhqd", p, vt).transpose(0, 2, 1, 3).reshape(B, S, dim)
    h = x + o @ params["wo"].T

    hn = rmsnorm(h, params["ffn_norm_w"])
    a = hn @ params["w1"].T
    swish = a * jax.nn.sigmoid(a)
    g = hn @ params["w3"].T
    return h + (swish * g) @ params["w2"].T


# ================================== main ==================================
if __name__ == "__main__":
    key = jax.random.PRNGKey(0)
    ks = jax.random.split(key, 8)
    scale = 0.05
    params = {
        "wq": jax.random.normal(ks[0], (DIM, DIM), jnp.float32) * scale,
        "wk": jax.random.normal(ks[1], (DIM, DIM), jnp.float32) * scale,
        "wv": jax.random.normal(ks[2], (DIM, DIM), jnp.float32) * scale,
        "wo": jax.random.normal(ks[3], (DIM, DIM), jnp.float32) * scale,
        "w1": jax.random.normal(ks[4], (HIDDEN, DIM), jnp.float32) * scale,
        "w2": jax.random.normal(ks[5], (DIM, HIDDEN), jnp.float32) * scale,
        "w3": jax.random.normal(ks[6], (HIDDEN, DIM), jnp.float32) * scale,
        "attn_norm_w": jnp.ones((DIM,), jnp.float32),   # matches nn.Parameter(torch.ones)
        "ffn_norm_w": jnp.ones((DIM,), jnp.float32),
    }

    x = jax.random.normal(ks[7], (BATCH, SEQ, DIM), jnp.float32)

    # one-time preparation (hoisted off the per-call critical path)
    prep = jax.tree_util.tree_map(jax.block_until_ready, prepare_params(params))
    consts, cos_half, sin_half = make_consts(BATCH, SEQ, N_HEADS, HEAD_DIM)
    consts = jax.block_until_ready(consts)

    out = jax.block_until_ready(encoder_block_forward(x, prep, consts))
    ref = jax.block_until_ready(ref_forward(x, params, cos_half, sin_half))
    np.testing.assert_allclose(np.asarray(out), np.asarray(ref), rtol=1e-4, atol=1e-4)

    print("KERNEL_OK")
</pallas_src>

<mosaic_0001>
module attributes {stable_mosaic.version = 11 : i64} {
  func.func @encoder_block_kernel(%arg0: memref<16x64xf32, #tpu.memory_space<vmem>>, %arg1: memref<64x320xf32, #tpu.memory_space<vmem>>, %arg2: memref<64x64xf32, #tpu.memory_space<vmem>>, %arg3: memref<64x384xf32, #tpu.memory_space<vmem>>, %arg4: memref<192x64xf32, #tpu.memory_space<vmem>>, %arg5: memref<56x64xf32, #tpu.memory_space<vmem>>, %arg6: memref<16x64xf32, #tpu.memory_space<vmem>>) attributes {dimension_semantics = [], scalar_prefetch = 0 : i64, scratch_operands = 0 : i64, tpu.core_type = #tpu.core_type<tc>} {
    %c0 = arith.constant 0 : index
    %c0_0 = arith.constant 0 : index
    %0 = vector.load %arg0[%c0, %c0_0] : memref<16x64xf32, #tpu.memory_space<vmem>>, vector<16x64xf32>
    %c0_1 = arith.constant 0 : index
    %c0_2 = arith.constant 0 : index
    %1 = vector.load %arg5[%c0_1, %c0_2] : memref<56x64xf32, #tpu.memory_space<vmem>>, vector<56x64xf32>
    %2 = vector.extract_strided_slice %1 {offsets = [0, 0], sizes = [16, 64], strides = [1, 1]} : vector<56x64xf32> to vector<16x64xf32>
    %3 = vector.extract_strided_slice %1 {offsets = [16, 0], sizes = [16, 64], strides = [1, 1]} : vector<56x64xf32> to vector<16x64xf32>
    %4 = vector.extract_strided_slice %1 {offsets = [32, 0], sizes = [16, 16], strides = [1, 1]} : vector<56x64xf32> to vector<16x16xf32>
    %5 = arith.mulf %0, %0 : vector<16x64xf32>
    %cst = arith.constant dense<0.000000e+00> : vector<16xf32>
    %6 = vector.multi_reduction <add>, %5, %cst [1] : vector<16x64xf32> to vector<16xf32>
    %7 = vector.shape_cast %6 : vector<16xf32> to vector<16x1xf32>
    %cst_3 = arith.constant 6.400000e+01 : f32
    %8 = vector.broadcast %cst_3 : f32 to vector<16x1xf32>
    %9 = arith.divf %7, %8 : vector<16x1xf32>
    %cst_4 = arith.constant 9.99999974E-6 : f32
    %10 = vector.broadcast %cst_4 : f32 to vector<16x1xf32>
    %11 = arith.addf %9, %10 : vector<16x1xf32>
    %12 = math.rsqrt %11 : vector<16x1xf32>
    %13 = vector.broadcast %12 : vector<16x1xf32> to vector<16x64xf32>
    %14 = arith.mulf %0, %13 : vector<16x64xf32>
    %c0_5 = arith.constant 0 : index
    %c0_6 = arith.constant 0 : index
    %15 = vector.load %arg1[%c0_5, %c0_6] : memref<64x320xf32, #tpu.memory_space<vmem>>, vector<64x320xf32>
    %cst_7 = arith.constant dense<0.000000e+00> : vector<16x320xf32>
    %16 = tpu.matmul %14, %15, %cst_7 {dimension_numbers = #tpu.dot_dimension_numbers<[1], [0], [0], [1], [0, 0, 1, 1], [], []>} : vector<16x64xf32>, vector<64x320xf32>, vector<16x320xf32> -> vector<16x320xf32>
    %17 = vector.extract_strided_slice %16 {offsets = [0, 0], sizes = [16, 64], strides = [1, 1]} : vector<16x320xf32> to vector<16x64xf32>
    %18 = vector.extract_strided_slice %16 {offsets = [0, 64], sizes = [16, 64], strides = [1, 1]} : vector<16x320xf32> to vector<16x64xf32>
    %19 = vector.extract_strided_slice %16 {offsets = [0, 128], sizes = [16, 64], strides = [1, 1]} : vector<16x320xf32> to vector<16x64xf32>
    %20 = vector.extract_strided_slice %16 {offsets = [0, 192], sizes = [16, 64], strides = [1, 1]} : vector<16x320xf32> to vector<16x64xf32>
    %21 = vector.extract_strided_slice %16 {offsets = [0, 256], sizes = [16, 64], strides = [1, 1]} : vector<16x320xf32> to vector<16x64xf32>
    %22 = arith.mulf %17, %2 : vector<16x64xf32>
    %23 = arith.mulf %18, %3 : vector<16x64xf32>
    %24 = arith.addf %22, %23 : vector<16x64xf32>
    %25 = arith.mulf %19, %2 : vector<16x64xf32>
    %26 = arith.mulf %20, %3 : vector<16x64xf32>
    %27 = arith.addf %25, %26 : vector<16x64xf32>
    %cst_8 = arith.constant 0.000000e+00 : f32
    %28 = vector.broadcast %cst_8 : f32 to vector<16x64xf32>
    %29 = vector.extract_strided_slice %1 {offsets = [48, 0], sizes = [1, 64], strides = [1, 1]} : vector<56x64xf32> to vector<1x64xf32>
    %30 = vector.broadcast %29 : vector<1x64xf32> to vector<16x64xf32>
    %31 = arith.mulf %24, %30 : vector<16x64xf32>
    %cst_9 = arith.constant dense<0.000000e+00> : vector<16x16xf32>
    %32 = tpu.matmul %31, %27, %cst_9 {dimension_numbers = #tpu.dot_dimension_numbers<[1], [1], [0], [0], [0, 0, 1, 0], [], []>} : vector<16x64xf32>, vector<16x64xf32>, vector<16x16xf32> -> vector<16x16xf32>
    %33 = arith.addf %32, %4 : vector<16x16xf32>
    %cst_10 = arith.constant dense<0xFF800000> : vector<16xf32>
    %34 = vector.multi_reduction <maximumf>, %33, %cst_10 [1] : vector<16x16xf32> to vector<16xf32>
    %35 = vector.shape_cast %34 : vector<16xf32> to vector<16x1xf32>
    %36 = vector.broadcast %35 : vector<16x1xf32> to vector<16x16xf32>
    %37 = arith.subf %33, %36 : vector<16x16xf32>
    %38 = math.exp %37 : vector<16x16xf32>
    %cst_11 = arith.constant dense<0.000000e+00> : vector<16xf32>
    %39 = vector.multi_reduction <add>, %38, %cst_11 [1] : vector<16x16xf32> to vector<16xf32>
    %40 = vector.shape_cast %39 : vector<16xf32> to vector<16x1xf32>
    %41 = tpu.reciprocal %40 : vector<16x1xf32> -> vector<16x1xf32>
    %42 = vector.broadcast %41 : vector<16x1xf32> to vector<16x16xf32>
    %43 = arith.mulf %38, %42 : vector<16x16xf32>
    %44 = vector.broadcast %29 : vector<1x64xf32> to vector<16x64xf32>
    %45 = arith.mulf %21, %44 : vector<16x64xf32>
    %cst_12 = arith.constant dense<0.000000e+00> : vector<16x64xf32>
    %46 = tpu.matmul %43, %45, %cst_12 {dimension_numbers = #tpu.dot_dimension_numbers<[1], [0], [0], [1], [0, 0, 1, 1], [], []>} : vector<16x16xf32>, vector<16x64xf32>, vector<16x64xf32> -> vector<16x64xf32>
    %47 = arith.addf %28, %46 : vector<16x64xf32>
    %48 = vector.extract_strided_slice %1 {offsets = [49, 0], sizes = [1, 64], strides = [1, 1]} : vector<56x64xf32> to vector<1x64xf32>
    %49 = vector.broadcast %48 : vector<1x64xf32> to vector<16x64xf32>
    %50 = arith.mulf %24, %49 : vector<16x64xf32>
    %cst_13 = arith.constant dense<0.000000e+00> : vector<16x16xf32>
    %51 = tpu.matmul %50, %27, %cst_13 {dimension_numbers = #tpu.dot_dimension_numbers<[1], [1], [0], [0], [0, 0, 1, 0], [], []>} : vector<16x64xf32>, vector<16x64xf32>, vector<16x16xf32> -> vector<16x16xf32>
    %52 = arith.addf %51, %4 : vector<16x16xf32>
    %cst_14 = arith.constant dense<0xFF800000> : vector<16xf32>
    %53 = vector.multi_reduction <maximumf>, %52, %cst_14 [1] : vector<16x16xf32> to vector<16xf32>
    %54 = vector.shape_cast %53 : vector<16xf32> to vector<16x1xf32>
    %55 = vector.broadcast %54 : vector<16x1xf32> to vector<16x16xf32>
    %56 = arith.subf %52, %55 : vector<16x16xf32>
    %57 = math.exp %56 : vector<16x16xf32>
    %cst_15 = arith.constant dense<0.000000e+00> : vector<16xf32>
    %58 = vector.multi_reduction <add>, %57, %cst_15 [1] : vector<16x16xf32> to vector<16xf32>
    %59 = vector.shape_cast %58 : vector<16xf32> to vector<16x1xf32>
    %60 = tpu.reciprocal %59 : vector<16x1xf32> -> vector<16x1xf32>
    %61 = vector.broadcast %60 : vector<16x1xf32> to vector<16x16xf32>
    %62 = arith.mulf %57, %61 : vector<16x16xf32>
    %63 = vector.broadcast %48 : vector<1x64xf32> to vector<16x64xf32>
    %64 = arith.mulf %21, %63 : vector<16x64xf32>
    %cst_16 = arith.constant dense<0.000000e+00> : vector<16x64xf32>
    %65 = tpu.matmul %62, %64, %cst_16 {dimension_numbers = #tpu.dot_dimension_numbers<[1], [0], [0], [1], [0, 0, 1, 1], [], []>} : vector<16x16xf32>, vector<16x64xf32>, vector<16x64xf32> -> vector<16x64xf32>
    %66 = arith.addf %47, %65 : vector<16x64xf32>
    %67 = vector.extract_strided_slice %1 {offsets = [50, 0], sizes = [1, 64], strides = [1, 1]} : vector<56x64xf32> to vector<1x64xf32>
    %68 = vector.broadcast %67 : vector<1x64xf32> to vector<16x64xf32>
    %69 = arith.mulf %24, %68 : vector<16x64xf32>
    %cst_17 = arith.constant dense<0.000000e+00> : vector<16x16xf32>
    %70 = tpu.matmul %69, %27, %cst_17 {dimension_numbers = #tpu.dot_dimension_numbers<[1], [1], [0], [0], [0, 0, 1, 0], [], []>} : vector<16x64xf32>, vector<16x64xf32>, vector<16x16xf32> -> vector<16x16xf32>
    %71 = arith.addf %70, %4 : vector<16x16xf32>
    %cst_18 = arith.constant dense<0xFF800000> : vector<16xf32>
    %72 = vector.multi_reduction <maximumf>, %71, %cst_18 [1] : vector<16x16xf32> to vector<16xf32>
    %73 = vector.shape_cast %72 : vector<16xf32> to vector<16x1xf32>
    %74 = vector.broadcast %73 : vector<16x1xf32> to vector<16x16xf32>
    %75 = arith.subf %71, %74 : vector<16x16xf32>
    %76 = math.exp %75 : vector<16x16xf32>
    %cst_19 = arith.constant dense<0.000000e+00> : vector<16xf32>
    %77 = vector.multi_reduction <add>, %76, %cst_19 [1] : vector<16x16xf32> to vector<16xf32>
    %78 = vector.shape_cast %77 : vector<16xf32> to vector<16x1xf32>
    %79 = tpu.reciprocal %78 : vector<16x1xf32> -> vector<16x1xf32>
    %80 = vector.broadcast %79 : vector<16x1xf32> to vector<16x16xf32>
    %81 = arith.mulf %76, %80 : vector<16x16xf32>
    %82 = vector.broadcast %67 : vector<1x64xf32> to vector<16x64xf32>
    %83 = arith.mulf %21, %82 : vector<16x64xf32>
    %cst_20 = arith.constant dense<0.000000e+00> : vector<16x64xf32>
    %84 = tpu.matmul %81, %83, %cst_20 {dimension_numbers = #tpu.dot_dimension_numbers<[1], [0], [0], [1], [0, 0, 1, 1], [], []>} : vector<16x16xf32>, vector<16x64xf32>, vector<16x64xf32> -> vector<16x64xf32>
    %85 = arith.addf %66, %84 : vector<16x64xf32>
    %86 = vector.extract_strided_slice %1 {offsets = [51, 0], sizes = [1, 64], strides = [1, 1]} : vector<56x64xf32> to vector<1x64xf32>
    %87 = vector.broadcast %86 : vector<1x64xf32> to vector<16x64xf32>
    %88 = arith.mulf %24, %87 : vector<16x64xf32>
    %cst_21 = arith.constant dense<0.000000e+00> : vector<16x16xf32>
    %89 = tpu.matmul %88, %27, %cst_21 {dimension_numbers = #tpu.dot_dimension_numbers<[1], [1], [0], [0], [0, 0, 1, 0], [], []>} : vector<16x64xf32>, vector<16x64xf32>, vector<16x16xf32> -> vector<16x16xf32>
    %90 = arith.addf %89, %4 : vector<16x16xf32>
    %cst_22 = arith.constant dense<0xFF800000> : vector<16xf32>
    %91 = vector.multi_reduction <maximumf>, %90, %cst_22 [1] : vector<16x16xf32> to vector<16xf32>
    %92 = vector.shape_cast %91 : vector<16xf32> to vector<16x1xf32>
    %93 = vector.broadcast %92 : vector<16x1xf32> to vector<16x16xf32>
    %94 = arith.subf %90, %93 : vector<16x16xf32>
    %95 = math.exp %94 : vector<16x16xf32>
    %cst_23 = arith.constant dense<0.000000e+00> : vector<16xf32>
    %96 = vector.multi_reduction <add>, %95, %cst_23 [1] : vector<16x16xf32> to vector<16xf32>
    %97 = vector.shape_cast %96 : vector<16xf32> to vector<16x1xf32>
    %98 = tpu.reciprocal %97 : vector<16x1xf32> -> vector<16x1xf32>
    %99 = vector.broadcast %98 : vector<16x1xf32> to vector<16x16xf32>
    %100 = arith.mulf %95, %99 : vector<16x16xf32>
    %101 = vector.broadcast %86 : vector<1x64xf32> to vector<16x64xf32>
    %102 = arith.mulf %21, %101 : vector<16x64xf32>
    %cst_24 = arith.constant dense<0.000000e+00> : vector<16x64xf32>
    %103 = tpu.matmul %100, %102, %cst_24 {dimension_numbers = #tpu.dot_dimension_numbers<[1], [0], [0], [1], [0, 0, 1, 1], [], []>} : vector<16x16xf32>, vector<16x64xf32>, vector<16x64xf32> -> vector<16x64xf32>
    %104 = arith.addf %85, %103 : vector<16x64xf32>
    %c0_25 = arith.constant 0 : index
    %c0_26 = arith.constant 0 : index
    %105 = vector.load %arg2[%c0_25, %c0_26] : memref<64x64xf32, #tpu.memory_space<vmem>>, vector<64x64xf32>
    %cst_27 = arith.constant dense<0.000000e+00> : vector<16x64xf32>
    %106 = tpu.matmul %104, %105, %cst_27 {dimension_numbers = #tpu.dot_dimension_numbers<[1], [0], [0], [1], [0, 0, 1, 1], [], []>} : vector<16x64xf32>, vector<64x64xf32>, vector<16x64xf32> -> vector<16x64xf32>
    %107 = arith.addf %0, %106 : vector<16x64xf32>
    %108 = arith.mulf %107, %107 : vector<16x64xf32>
    %cst_28 = arith.constant dense<0.000000e+00> : vector<16xf32>
    %109 = vector.multi_reduction <add>, %108, %cst_28 [1] : vector<16x64xf32> to vector<16xf32>
    %110 = vector.shape_cast %109 : vector<16xf32> to vector<16x1xf32>
    %cst_29 = arith.constant 6.400000e+01 : f32
    %111 = vector.broadcast %cst_29 : f32 to vector<16x1xf32>
    %112 = arith.divf %110, %111 : vector<16x1xf32>
    %cst_30 = arith.constant 9.99999974E-6 : f32
    %113 = vector.broadcast %cst_30 : f32 to vector<16x1xf32>
    %114 = arith.addf %112, %113 : vector<16x1xf32>
    %115 = math.rsqrt %114 : vector<16x1xf32>
    %116 = vector.broadcast %115 : vector<16x1xf32> to vector<16x64xf32>
    %117 = arith.mulf %107, %116 : vector<16x64xf32>
    %c0_31 = arith.constant 0 : index
    %c0_32 = arith.constant 0 : index
    %118 = vector.load %arg3[%c0_31, %c0_32] : memref<64x384xf32, #tpu.memory_space<vmem>>, vector<64x384xf32>
    %cst_33 = arith.constant dense<0.000000e+00> : vector<16x384xf32>
    %119 = tpu.matmul %117, %118, %cst_33 {dimension_numbers = #tpu.dot_dimension_numbers<[1], [0], [0], [1], [0, 0, 1, 1], [], []>} : vector<16x64xf32>, vector<64x384xf32>, vector<16x384xf32> -> vector<16x384xf32>
    %120 = vector.extract_strided_slice %119 {offsets = [0, 0], sizes = [16, 192], strides = [1, 1]} : vector<16x384xf32> to vector<16x192xf32>
    %121 = vector.extract_strided_slice %119 {offsets = [0, 192], sizes = [16, 192], strides = [1, 1]} : vector<16x384xf32> to vector<16x192xf32>
    %cst_34 = arith.constant 0.000000e+00 : f32
    %122 = vector.broadcast %cst_34 : f32 to vector<16x192xf32>
    %123 = arith.subf %122, %120 : vector<16x192xf32>
    %124 = math.exp %123 : vector<16x192xf32>
    %cst_35 = arith.constant 1.000000e+00 : f32
    %125 = vector.broadcast %cst_35 : f32 to vector<16x192xf32>
    %126 = arith.addf %125, %124 : vector<16x192xf32>
    %127 = tpu.reciprocal %126 : vector<16x192xf32> -> vector<16x192xf32>
    %128 = arith.mulf %120, %127 : vector<16x192xf32>
    %129 = arith.mulf %128, %121 : vector<16x192xf32>
    %c0_36 = arith.constant 0 : index
    %c0_37 = arith.constant 0 : index
    %130 = vector.load %arg4[%c0_36, %c0_37] : memref<192x64xf32, #tpu.memory_space<vmem>>, vector<192x64xf32>
    %cst_38 = arith.constant dense<0.000000e+00> : vector<16x64xf32>
    %131 = tpu.matmul %129, %130, %cst_38 {dimension_numbers = #tpu.dot_dimension_numbers<[1], [0], [0], [1], [0, 0, 1, 1], [], []>} : vector<16x192xf32>, vector<192x64xf32>, vector<16x64xf32> -> vector<16x64xf32>
    %132 = arith.addf %107, %131 : vector<16x64xf32>
    %c0_39 = arith.constant 0 : index
    %c0_40 = arith.constant 0 : index
    %133 = vector.load %arg6[%c0_39, %c0_40] : memref<16x64xf32, #tpu.memory_space<vmem>>, vector<16x64xf32>
    tpu.vector_store %arg6[%c0_39, %c0_40], %132 {strides = array<i32>} : memref<16x64xf32, #tpu.memory_space<vmem>>, vector<16x64xf32>,
    return
  }
}

</mosaic_0001>

<llo_original>
// kernel: encoder_block_forward.1
$region0: #{encoder_block_forward.1}
  #allocation0 [shape = 'u32[]', space=smem, size = 0x4, offset = 0x4, fixed_abs, tag = 'smem constant byte address 0x4 - core index']
  #allocation1 [shape = 'u32[144,128]{1,0:T(1,128)}', space=vmem, size = 0x12000, scoped, tag = 'internal scratch']
  %s0 = inlined_call_operand.vmem [shape: f32[16,64], index: 0, kind: input, shape index: {}]
  %s1 = inlined_call_operand.vmem [shape: f32[64,320], index: 1, kind: input, shape index: {}]
  %s2 = inlined_call_operand.vmem [shape: f32[64,64], index: 2, kind: input, shape index: {}]
  %s3 = inlined_call_operand.hbm [shape: f32[64,384], index: 3, kind: input, shape index: {}]
  %s4 = inlined_call_operand.vmem [shape: f32[192,64], index: 4, kind: input, shape index: {}]
  %s5 = inlined_call_operand.vmem [shape: f32[56,64], index: 5, kind: input, shape index: {}]
  %s6 = inlined_call_operand.hbm [shape: f32[16,64], index: 6, kind: output, shape index: {}]
  %s7 = sld [smem:[#allocation0]]
  $region38: #{encoder_block_forward.1} parent=0
    _
  %s9 = ssub.s32 1, %s7
  %s10 = scalar_select 0, %s9, %s7
  $region1: #{encoder_block_forward.1} parent=0
    #allocation2 [shape = 'u8[98304]{0}', space=vmem, size = 0x18000, scoped, tag = 'input window, operand 3, single buffered']
    #allocation3 [shape = 's32[1]{0}', space=sflag, size = 0x4, scoped, tag = 'scoped memory for encoder_block_forward.1']
    #allocation4 [shape = 's32[1]{0}', space=sflag, size = 0x4, scoped, tag = 'scoped memory for encoder_block_forward.1']
    #allocation5 [shape = 'u8[8192]{0}', space=vmem, size = 0x2000, scoped, tag = 'output window, operand 0, single buffered']
    %11 = vsyncpa [#allocation3], 0
    %12 = vsyncpa [#allocation4], 0
    // Predicated region
    $region2: #{encoder_block_forward.1} parent=1 // pred_check
      _
    $region3: #{encoder_block_forward.1} parent=1 // pred_check_branch
      %14 = sbr.rel (0) target = $region5
    $region4: #{encoder_block_forward.1} parent=1 // pred_region
      _
    $region5: #{encoder_block_forward.1} parent=1 // pred_fallthru
      _
    // Predicated region
    $region6: #{encoder_block_forward.1} parent=1 // pred_check
      _
    $region7: #{encoder_block_forward.1} parent=1 // pred_check_branch
      %16 = sbr.rel (0) target = $region9
    $region8: #{encoder_block_forward.1} parent=1 // pred_region
      _
    $region9: #{encoder_block_forward.1} parent=1 // pred_fallthru
      _
    // Predicated region
    $region10: #{encoder_block_forward.1} parent=1 // pred_check
      _
    $region11: #{encoder_block_forward.1} parent=1 // pred_check_branch
      %18 = sbr.rel (0) target = $region13
    $region12: #{encoder_block_forward.1} parent=1 // pred_region
      _
    $region13: #{encoder_block_forward.1} parent=1 // pred_fallthru
      _
    // Predicated region
    $region14: #{encoder_block_forward.1} parent=1 // pred_check
      _
    $region15: #{encoder_block_forward.1} parent=1 // pred_check_branch
      %20 = sbr.rel (0) target = $region17
    $region16: #{encoder_block_forward.1} parent=1 // pred_region
      %s22 = ssub.s32 3072, 3072
      %23 = vsyncadd [#allocation3], %s22
      %s24 = sshll.u32 [#allocation2], 4
      %s25 = int_to_ptr.vmem [resolvable:$true] %s24
      %30 = dma.hbm_to_vmem [thread:$0]  %s3, 3072, %s25, [#allocation3], 384, 384, 24
    $region17: #{encoder_block_forward.1} parent=1 // pred_fallthru
      _
    // Predicated region
    $region18: #{encoder_block_forward.1} parent=1 // pred_check
      _
    $region19: #{encoder_block_forward.1} parent=1 // pred_check_branch
      %32 = sbr.rel (0) target = $region21
    $region20: #{encoder_block_forward.1} parent=1 // pred_region
      _
    $region21: #{encoder_block_forward.1} parent=1 // pred_fallthru
      _
    // Predicated region
    $region22: #{encoder_block_forward.1} parent=1 // pred_check
      _
    $region23: #{encoder_block_forward.1} parent=1 // pred_check_branch
      %34 = sbr.rel (0) target = $region25
    $region24: #{encoder_block_forward.1} parent=1 // pred_region
      _
    $region25: #{encoder_block_forward.1} parent=1 // pred_fallthru
      _
    // Predicated region
    $region26: #{encoder_block_forward.1} parent=1 // pred_check
      _
    $region27: #{encoder_block_forward.1} parent=1 // pred_check_branch
      %36 = sbr.rel (0) target = $region29
    $region28: #{encoder_block_forward.1} parent=1 // pred_region
      %37 = dma.done [#allocation3], 3072
    $region29: #{encoder_block_forward.1} parent=1 // pred_fallthru
      _
    %v38 = vld [vmem:[%s0] sm:$0xff]
    %v39 = vld [vmem:[%s0 + $0x8] sm:$0xff]
    %v40 = vld [vmem:[%s5] sm:$0xff]
    %v41 = vld [vmem:[%s5 + $0x8] sm:$0xff]
    %v42 = vld [vmem:[%s5 + $0x10] sm:$0xff]
    %v43 = vld [vmem:[%s5 + $0x18] sm:$0xff]
    %v44 = vld [vmem:[%s5 + $0x20] sm:$0xff]
    %v45 = vld [vmem:[%s5 + $0x28] sm:$0xff]
    %v46 = vld [vmem:[%s5 + $0x30] sm:$0xff]
    %v47 = vmul.f32 %v38, %v38
    %v48 = vmul.f32 %v39, %v39
    %vm49 = vcmask 523264
    %v50 = vsel %vm49, %v47, 0.0
    %51 = vadd.xlane.f32.xlu0 %v50
    %v52 = vpop.xlane.xlu0 %51
    %v53 = vsel %vm49, %v48, 0.0
    %54 = vadd.xlane.f32.xlu0 %v53
    %v55 = vpop.xlane.xlu0 %54
    %v56 = vrcp.pop 64.0
    %v57 = vmul.f32 %v52, %v56
    %v58 = vmul.f32 %v55, %v56
    %v59 = vadd.f32 %v57, 1e-05
    %v60 = vadd.f32 %v58, 1e-05
    %v61 = vrsqrt.pop %v59
    %v62 = vrsqrt.pop %v60
    %v63 = vmul.f32 %v38, %v61
    %v64 = vmul.f32 %v39, %v62
    %v65 = vld [vmem:[%s1] sm:$0xff]
    %v66 = vld [vmem:[%s1 + $0x8] sm:$0xff]
    %v67 = vld [vmem:[%s1 + $0x10] sm:$0xff]
    %v68 = vld [vmem:[%s1 + $0x18] sm:$0xff]
    %v69 = vld [vmem:[%s1 + $0x20] sm:$0xff]
    %v70 = vld [vmem:[%s1 + $0x28] sm:$0xff]
    %v71 = vld [vmem:[%s1 + $0x30] sm:$0xff]
    %v72 = vld [vmem:[%s1 + $0x38] sm:$0xff]
    %v73 = vld [vmem:[%s1 + $0x40] sm:$0xff]
    %v74 = vld [vmem:[%s1 + $0x48] sm:$0xff]
    %v75 = vld [vmem:[%s1 + $0x50] sm:$0xff]
    %v76 = vld [vmem:[%s1 + $0x58] sm:$0xff]
    %v77 = vld [vmem:[%s1 + $0x60] sm:$0xff]
    %v78 = vld [vmem:[%s1 + $0x68] sm:$0xff]
    %v79 = vld [vmem:[%s1 + $0x70] sm:$0xff]
    %v80 = vld [vmem:[%s1 + $0x78] sm:$0xff]
    %v81 = vld [vmem:[%s1 + $0x80] sm:$0xff]
    %v82 = vld [vmem:[%s1 + $0x88] sm:$0xff]
    %v83 = vld [vmem:[%s1 + $0x90] sm:$0xff]
    %v84 = vld [vmem:[%s1 + $0x98] sm:$0xff]
    %v85 = vld [vmem:[%s1 + $0xa0] sm:$0xff]
    %v86 = vld [vmem:[%s1 + $0xa8] sm:$0xff]
    %v87 = vld [vmem:[%s1 + $0xb0] sm:$0xff]
    %v88 = vld [vmem:[%s1 + $0xb8] sm:$0xff]
    %v90 = vsel %vm49, %v63, 0
    %v93 = vsel %vm49, %v64, 0
    %95 = vmatprep.subr.mxu0 0.0
    %96 = vmatpush1.msra.mxu0 0.0
    %97 = vmatprep.subr.mxu0 0.0
    %98 = vmatpush1.msra.mxu0 0.0
    %99 = vmatprep.subr.mxu0 0.0
    %100 = vmatpush1.msra.mxu0 0.0
    %101 = vmatprep.subr.mxu0 0.0
    %102 = vmatpush1.msra.mxu0 0.0
    %103 = vmatprep.subr.mxu0 0.0
    %104 = vmatpush1.msra.mxu0 0.0
    %105 = vmatprep.subr.mxu0 0.0
    %106 = vmatpush1.msra.mxu0 0.0
    %107 = vmatprep.subr.mxu0 0.0
    %108 = vmatpush1.msra.mxu0 0.0
    %109 = vmatprep.subr.mxu0 0.0
    %110 = vmatpush1.msra.mxu0 0.0
    %111 = vmatprep.subr.mxu0 %v87
    %112 = vmatpush1.msra.mxu0 %v86
    %113 = vmatprep.subr.mxu0 %v84
    %114 = vmatpush1.msra.mxu0 %v83
    %115 = vmatprep.subr.mxu0 %v81
    %116 = vmatpush1.msra.mxu0 %v80
    %117 = vmatprep.subr.mxu0 %v78
    %118 = vmatpush1.msra.mxu0 %v77
    %119 = vmatprep.subr.mxu0 %v75
    %120 = vmatpush1.msra.mxu0 %v74
    %121 = vmatprep.subr.mxu0 %v72
    %122 = vmatpush1.msra.mxu0 %v71
    %123 = vmatprep.subr.mxu0 %v69
    %124 = vmatpush1.msra.mxu0 %v68
    %125 = vmatprep.subr.mxu0 %v66
    %126 = vmatpush1.msra.mxu0 %v65
    %127 = vmatprep.subr.mxu0 0.0
    %128 = vmatpush2.msra.mxu0 0.0
    %129 = vmatprep.subr.mxu0 0.0
    %130 = vmatpush2.msra.mxu0 0.0
    %131 = vmatprep.subr.mxu0 0.0
    %132 = vmatpush2.msra.mxu0 0.0
    %133 = vmatprep.subr.mxu0 0.0
    %134 = vmatpush2.msra.mxu0 0.0
    %135 = vmatprep.subr.mxu0 0.0
    %136 = vmatpush2.msra.mxu0 0.0
    %137 = vmatprep.subr.mxu0 0.0
    %138 = vmatpush2.msra.mxu0 0.0
    %139 = vmatprep.subr.mxu0 0.0
    %140 = vmatpush2.msra.mxu0 0.0
    %141 = vmatprep.subr.mxu0 0.0
    %142 = vmatpush2.msra.mxu0 0.0
    %143 = vmatprep.subr.mxu0 0.0
    %144 = vmatpush2.msra.mxu0 0.0
    %145 = vmatprep.subr.mxu0 0.0
    %146 = vmatpush2.msra.mxu0 0.0
    %147 = vmatprep.subr.mxu0 0.0
    %148 = vmatpush2.msra.mxu0 0.0
    %149 = vmatprep.subr.mxu0 0.0
    %150 = vmatpush2.msra.mxu0 0.0
    %151 = vmatprep.subr.mxu0 0.0
    %152 = vmatpush2.msra.mxu0 0.0
    %153 = vmatprep.subr.mxu0 0.0
    %154 = vmatpush2.msra.mxu0 0.0
    %155 = vmatprep.subr.mxu0 0.0
    %156 = vmatpush2.msra.mxu0 0.0
    %157 = vmatprep.subr.mxu0 0.0
    %158 = vmatpush2.msra.mxu0 0.0
    %159 = vmatprep.mubr.f32.mxu0 0.0
    %160 = vmatmul.mubr.f32.gmra.mxu0 %v90
    %v161 = vpop.f32.mrf.mxu0
    %v162 = vadd.f32 0.0, %v161
    %v163 = vpop.f32.mrf.mxu0
    %v164 = vadd.f32 0.0, %v163
    %165 = vmatprep.mubr.f32.mxu0 0.0
    %166 = vmatmul.mubr.f32.gmra.mxu0 %v93
    %v167 = vpop.f32.mrf.mxu0
    %v168 = vadd.f32 0.0, %v167
    %v169 = vpop.f32.mrf.mxu0
    %v170 = vadd.f32 0.0, %v169
    %171 = vdwg.mxu0
    %172 = vmatprep.subr.mxu0 0.0
    %173 = vmatpush1.msra.mxu0 0.0
    %174 = vmatprep.subr.mxu0 0.0
    %175 = vmatpush1.msra.mxu0 0.0
    %176 = vmatprep.subr.mxu0 0.0
    %177 = vmatpush1.msra.mxu0 0.0
    %178 = vmatprep.subr.mxu0 0.0
    %179 = vmatpush1.msra.mxu0 0.0
    %180 = vmatprep.subr.mxu0 0.0
    %181 = vmatpush1.msra.mxu0 0.0
    %182 = vmatprep.subr.mxu0 0.0
    %183 = vmatpush1.msra.mxu0 0.0
    %184 = vmatprep.subr.mxu0 0.0
    %185 = vmatpush1.msra.mxu0 0.0
    %186 = vmatprep.subr.mxu0 0.0
    %187 = vmatpush1.msra.mxu0 0.0
    %188 = vmatprep.subr.mxu0 0.0
    %189 = vmatpush1.msra.mxu0 %v88
    %190 = vmatprep.subr.mxu0 0.0
    %191 = vmatpush1.msra.mxu0 %v85
    %192 = vmatprep.subr.mxu0 0.0
    %193 = vmatpush1.msra.mxu0 %v82
    %194 = vmatprep.subr.mxu0 0.0
    %195 = vmatpush1.msra.mxu0 %v79
    %196 = vmatprep.subr.mxu0 0.0
    %197 = vmatpush1.msra.mxu0 %v76
    %198 = vmatprep.subr.mxu0 0.0
    %199 = vmatpush1.msra.mxu0 %v73
    %200 = vmatprep.subr.mxu0 0.0
    %201 = vmatpush1.msra.mxu0 %v70
    %202 = vmatprep.subr.mxu0 0.0
    %203 = vmatpush1.msra.mxu0 %v67
    %204 = vmatprep.subr.mxu0 0.0
    %205 = vmatpush2.msra.mxu0 0.0
    %206 = vmatprep.subr.mxu0 0.0
    %207 = vmatpush2.msra.mxu0 0.0
    %208 = vmatprep.subr.mxu0 0.0
    %209 = vmatpush2.msra.mxu0 0.0
    %210 = vmatprep.subr.mxu0 0.0
    %211 = vmatpush2.msra.mxu0 0.0
    %212 = vmatprep.subr.mxu0 0.0
    %213 = vmatpush2.msra.mxu0 0.0
    %214 = vmatprep.subr.mxu0 0.0
    %215 = vmatpush2.msra.mxu0 0.0
    %216 = vmatprep.subr.mxu0 0.0
    %217 = vmatpush2.msra.mxu0 0.0
    %218 = vmatprep.subr.mxu0 0.0
    %219 = vmatpush2.msra.mxu0 0.0
    %220 = vmatprep.subr.mxu0 0.0
    %221 = vmatpush2.msra.mxu0 0.0
    %222 = vmatprep.subr.mxu0 0.0
    %223 = vmatpush2.msra.mxu0 0.0
    %224 = vmatprep.subr.mxu0 0.0
    %225 = vmatpush2.msra.mxu0 0.0
    %226 = vmatprep.subr.mxu0 0.0
    %227 = vmatpush2.msra.mxu0 0.0
    %228 = vmatprep.subr.mxu0 0.0
    %229 = vmatpush2.msra.mxu0 0.0
    %230 = vmatprep.subr.mxu0 0.0
    %231 = vmatpush2.msra.mxu0 0.0
    %232 = vmatprep.subr.mxu0 0.0
    %233 = vmatpush2.msra.mxu0 0.0
    %234 = vmatprep.subr.mxu0 0.0
    %235 = vmatpush2.msra.mxu0 0.0
    %236 = vmatprep.mubr.f32.mxu0 0.0
    %237 = vmatmul.mubr.f32.gmra.mxu0 %v90
    %v238 = vpop.f32.mrf.mxu0
    %v239 = vadd.f32 0.0, %v238
    %v240 = vpop.f32.mrf.mxu0
    %241 = vmatprep.mubr.f32.mxu0 0.0
    %242 = vmatmul.mubr.f32.gmra.mxu0 %v93
    %v243 = vpop.f32.mrf.mxu0
    %v244 = vadd.f32 0.0, %v243
    %v245 = vpop.f32.mrf.mxu0
    %246 = vdwg.mxu0
    %v247 = vmul.f32 %v162, %v40
    %v248 = vmul.f32 %v168, %v41
    %251 = vrot.lane.b32.xlu0 %v42, 64
    %v252 = vpop.permute.xlu0 %251
    %253 = vrot.lane.b32.xlu0 %v43, 64
    %v254 = vpop.permute.xlu0 %253
    %v257 = vmul.f32 %v162, %v252
    %v258 = vmul.f32 %v168, %v254
    %261 = vrot.lane.b32.xlu0 %v257, 64
    %v262 = vpop.permute.xlu0 %261
    %263 = vrot.lane.b32.xlu0 %v258, 64
    %v264 = vpop.permute.xlu0 %263
    %v267 = vadd.f32 %v247, %v262
    %v268 = vadd.f32 %v248, %v264
    %v269 = vmul.f32 %v164, %v40
    %v270 = vmul.f32 %v170, %v41
    %v271 = vmul.f32 %v164, %v252
    %v272 = vmul.f32 %v170, %v254
    %275 = vrot.lane.b32.xlu0 %v271, 64
    %v276 = vpop.permute.xlu0 %275
    %277 = vrot.lane.b32.xlu0 %v272, 64
    %v278 = vpop.permute.xlu0 %277
    %v281 = vadd.f32 %v269, %v276
    %v282 = vadd.f32 %v270, %v278
    %v283 = vlaneseq
    %v284 = vshrl.u32 %v283, 7
    %v285 = vsub.s32 0, %v284
    %v286 = vrot.slane %v46, %v285
    %v287 = vmul.f32 %v267, %v286
    %v288 = vmul.f32 %v268, %v286
    %v290 = vsel %vm49, %v287, 0
    %v293 = vsel %vm49, %v288, 0
    %v296 = vsel %vm49, %v281, 0
    %v299 = vsel %vm49, %v282, 0
    %301 = vmatprep.subr.mxu0 0.0
    %302 = vmatpush1.xpose.msra.mxu0 0.0
    %303 = vmatprep.subr.mxu0 0.0
    %304 = vmatpush1.xpose.msra.mxu0 0.0
    %305 = vmatprep.subr.mxu0 0.0
    %306 = vmatpush1.xpose.msra.mxu0 0.0
    %307 = vmatprep.subr.mxu0 0.0
    %308 = vmatpush1.xpose.msra.mxu0 0.0
    %309 = vmatprep.subr.mxu0 0.0
    %310 = vmatpush1.xpose.msra.mxu0 0.0
    %311 = vmatprep.subr.mxu0 0.0
    %312 = vmatpush1.xpose.msra.mxu0 0.0
    %313 = vmatprep.subr.mxu0 0.0
    %314 = vmatpush1.xpose.msra.mxu0 0.0
    %315 = vmatprep.subr.mxu0 0.0
    %316 = vmatpush1.xpose.msra.mxu0 0.0
    %317 = vmatprep.subr.mxu0 0.0
    %318 = vmatpush1.xpose.msra.mxu0 0.0
    %319 = vmatprep.subr.mxu0 0.0
    %320 = vmatpush1.xpose.msra.mxu0 0.0
    %321 = vmatprep.subr.mxu0 0.0
    %322 = vmatpush1.xpose.msra.mxu0 0.0
    %323 = vmatprep.subr.mxu0 0.0
    %324 = vmatpush1.xpose.msra.mxu0 0.0
    %325 = vmatprep.subr.mxu0 0.0
    %326 = vmatpush1.xpose.msra.mxu0 0.0
    %327 = vmatprep.subr.mxu0 0.0
    %328 = vmatpush1.xpose.msra.mxu0 0.0
    %329 = vmatprep.subr.mxu0 0.0
    %330 = vmatpush1.xpose.msra.mxu0 %v299
    %331 = vmatprep.subr.mxu0 0.0
    %332 = vmatpush1.xpose.msra.mxu0 %v296
    %333 = vmatprep.subr.mxu0 0.0
    %334 = vmatpush2.xpose.msra.mxu0 0.0
    %335 = vmatprep.subr.mxu0 0.0
    %336 = vmatpush2.xpose.msra.mxu0 0.0
    %337 = vmatprep.subr.mxu0 0.0
    %338 = vmatpush2.xpose.msra.mxu0 0.0
    %339 = vmatprep.subr.mxu0 0.0
    %340 = vmatpush2.xpose.msra.mxu0 0.0
    %341 = vmatprep.subr.mxu0 0.0
    %342 = vmatpush2.xpose.msra.mxu0 0.0
    %343 = vmatprep.subr.mxu0 0.0
    %344 = vmatpush2.xpose.msra.mxu0 0.0
    %345 = vmatprep.subr.mxu0 0.0
    %346 = vmatpush2.xpose.msra.mxu0 0.0
    %347 = vmatprep.subr.mxu0 0.0
    %348 = vmatpush2.xpose.msra.mxu0 0.0
    %349 = vmatprep.subr.mxu0 0.0
    %350 = vmatpush2.xpose.msra.mxu0 0.0
    %351 = vmatprep.subr.mxu0 0.0
    %352 = vmatpush2.xpose.msra.mxu0 0.0
    %353 = vmatprep.subr.mxu0 0.0
    %354 = vmatpush2.xpose.msra.mxu0 0.0
    %355 = vmatprep.subr.mxu0 0.0
    %356 = vmatpush2.xpose.msra.mxu0 0.0
    %357 = vmatprep.subr.mxu0 0.0
    %358 = vmatpush2.xpose.msra.mxu0 0.0
    %359 = vmatprep.subr.mxu0 0.0
    %360 = vmatpush2.xpose.msra.mxu0 0.0
    %361 = vmatprep.subr.mxu0 0.0
    %362 = vmatpush2.xpose.msra.mxu0 0.0
    %363 = vmatprep.subr.mxu0 0.0
    %364 = vmatpush2.xpose.msra.mxu0 0.0
    %365 = vmatprep.mubr.f32.mxu0 0.0
    %366 = vmatmul.mubr.f32.gmra.mxu0 %v290
    %v367 = vpop.f32.mrf.mxu0
    %v368 = vadd.f32 %v44, %v367
    %v369 = vpop.f32.mrf.mxu0
    %370 = vmatprep.mubr.f32.mxu0 0.0
    %371 = vmatmul.mubr.f32.gmra.mxu0 %v293
    %v372 = vpop.f32.mrf.mxu0
    %v373 = vadd.f32 %v45, %v372
    %v374 = vpop.f32.mrf.mxu0
    %375 = vdwg.mxu0
    %vm376 = vcmask 130048
    %v377 = vsel %vm376, %v368, -inf
    %378 = vmax.xlane.f32.xlu0 %v377
    %v379 = vpop.xlane.xlu0 %378
    %v380 = vsel %vm376, %v373, -inf
    %381 = vmax.xlane.f32.xlu0 %v380
    %v382 = vpop.xlane.xlu0 %381
    %v383 = vsub.f32 %v368, %v379
    %v384 = vsub.f32 %v373, %v382
    %v385 = vmul.f32 %v383, 1.442695
    %v386 = vpow.pop %v385
    %v387 = vmul.f32 %v384, 1.442695
    %v388 = vpow.pop %v387
    %v389 = vsel %vm376, %v386, 0.0
    %390 = vadd.xlane.f32.xlu0 %v389
    %v391 = vpop.xlane.xlu0 %390
    %v392 = vsel %vm376, %v388, 0.0
    %393 = vadd.xlane.f32.xlu0 %v392
    %v394 = vpop.xlane.xlu0 %393
    %v395 = vrcp.pop %v391
    %v396 = vrcp.pop %v394
    %v397 = vmul.f32 %v386, %v395
    %v398 = vmul.f32 %v388, %v396
    %v399 = vmul.f32 %v239, %v286
    %v400 = vmul.f32 %v244, %v286
    %v401 = vlaneseq
    %v402 = vshrl.u32 %v401, 7
    %v403 = vsub.s32 1, %v402
    %v404 = vrot.slane %v46, %v403
    %v405 = vmul.f32 %v267, %v404
    %v406 = vmul.f32 %v268, %v404
    %v408 = vsel %vm49, %v405, 0
    %v411 = vsel %vm49, %v406, 0
    %413 = vmatprep.subr.mxu0 0.0
    %414 = vmatpush1.xpose.msra.mxu0 0.0
    %415 = vmatprep.subr.mxu0 0.0
    %416 = vmatpush1.xpose.msra.mxu0 0.0
    %417 = vmatprep.subr.mxu0 0.0
    %418 = vmatpush1.xpose.msra.mxu0 0.0
    %419 = vmatprep.subr.mxu0 0.0
    %420 = vmatpush1.xpose.msra.mxu0 0.0
    %421 = vmatprep.subr.mxu0 0.0
    %422 = vmatpush1.xpose.msra.mxu0 0.0
    %423 = vmatprep.subr.mxu0 0.0
    %424 = vmatpush1.xpose.msra.mxu0 0.0
    %425 = vmatprep.subr.mxu0 0.0
    %426 = vmatpush1.xpose.msra.mxu0 0.0
    %427 = vmatprep.subr.mxu0 0.0
    %428 = vmatpush1.xpose.msra.mxu0 0.0
    %429 = vmatprep.subr.mxu0 0.0
    %430 = vmatpush1.xpose.msra.mxu0 0.0
    %431 = vmatprep.subr.mxu0 0.0
    %432 = vmatpush1.xpose.msra.mxu0 0.0
    %433 = vmatprep.subr.mxu0 0.0
    %434 = vmatpush1.xpose.msra.mxu0 0.0
    %435 = vmatprep.subr.mxu0 0.0
    %436 = vmatpush1.xpose.msra.mxu0 0.0
    %437 = vmatprep.subr.mxu0 0.0
    %438 = vmatpush1.xpose.msra.mxu0 0.0
    %439 = vmatprep.subr.mxu0 0.0
    %440 = vmatpush1.xpose.msra.mxu0 0.0
    %441 = vmatprep.subr.mxu0 0.0
    %442 = vmatpush1.xpose.msra.mxu0 %v299
    %443 = vmatprep.subr.mxu0 0.0
    %444 = vmatpush1.xpose.msra.mxu0 %v296
    %445 = vmatprep.subr.mxu0 0.0
    %446 = vmatpush2.xpose.msra.mxu0 0.0
    %447 = vmatprep.subr.mxu0 0.0
    %448 = vmatpush2.xpose.msra.mxu0 0.0
    %449 = vmatprep.subr.mxu0 0.0
    %450 = vmatpush2.xpose.msra.mxu0 0.0
    %451 = vmatprep.subr.mxu0 0.0
    %452 = vmatpush2.xpose.msra.mxu0 0.0
    %453 = vmatprep.subr.mxu0 0.0
    %454 = vmatpush2.xpose.msra.mxu0 0.0
    %455 = vmatprep.subr.mxu0 0.0
    %456 = vmatpush2.xpose.msra.mxu0 0.0
    %457 = vmatprep.subr.mxu0 0.0
    %458 = vmatpush2.xpose.msra.mxu0 0.0
    %459 = vmatprep.subr.mxu0 0.0
    %460 = vmatpush2.xpose.msra.mxu0 0.0
    %461 = vmatprep.subr.mxu0 0.0
    %462 = vmatpush2.xpose.msra.mxu0 0.0
    %463 = vmatprep.subr.mxu0 0.0
    %464 = vmatpush2.xpose.msra.mxu0 0.0
    %465 = vmatprep.subr.mxu0 0.0
    %466 = vmatpush2.xpose.msra.mxu0 0.0
    %467 = vmatprep.subr.mxu0 0.0
    %468 = vmatpush2.xpose.msra.mxu0 0.0
    %469 = vmatprep.subr.mxu0 0.0
    %470 = vmatpush2.xpose.msra.mxu0 0.0
    %471 = vmatprep.subr.mxu0 0.0
    %472 = vmatpush2.xpose.msra.mxu0 0.0
    %473 = vmatprep.subr.mxu0 0.0
    %474 = vmatpush2.xpose.msra.mxu0 0.0
    %475 = vmatprep.subr.mxu0 0.0
    %476 = vmatpush2.xpose.msra.mxu0 0.0
    %477 = vmatprep.mubr.f32.mxu0 0.0
    %478 = vmatmul.mubr.f32.gmra.mxu0 %v408
    %v479 = vpop.f32.mrf.mxu0
    %v480 = vadd.f32 %v44, %v479
    %v481 = vpop.f32.mrf.mxu0
    %482 = vmatprep.mubr.f32.mxu0 0.0
    %483 = vmatmul.mubr.f32.gmra.mxu0 %v411
    %v484 = vpop.f32.mrf.mxu0
    %v485 = vadd.f32 %v45, %v484
    %v486 = vpop.f32.mrf.mxu0
    %487 = vdwg.mxu0
    %v488 = vsel %vm376, %v480, -inf
    %489 = vmax.xlane.f32.xlu0 %v488
    %v490 = vpop.xlane.xlu0 %489
    %v491 = vsel %vm376, %v485, -inf
    %492 = vmax.xlane.f32.xlu0 %v491
    %v493 = vpop.xlane.xlu0 %492
    %v494 = vsub.f32 %v480, %v490
    %v495 = vsub.f32 %v485, %v493
    %v496 = vmul.f32 %v494, 1.442695
    %v497 = vpow.pop %v496
    %v498 = vmul.f32 %v495, 1.442695
    %v499 = vpow.pop %v498
    %v500 = vsel %vm376, %v497, 0.0
    %501 = vadd.xlane.f32.xlu0 %v500
    %v502 = vpop.xlane.xlu0 %501
    %v503 = vsel %vm376, %v499, 0.0
    %504 = vadd.xlane.f32.xlu0 %v503
    %v505 = vpop.xlane.xlu0 %504
    %v506 = vrcp.pop %v502
    %v507 = vrcp.pop %v505
    %v508 = vmul.f32 %v497, %v506
    %v509 = vmul.f32 %v499, %v507
    %v510 = vmul.f32 %v239, %v404
    %v511 = vmul.f32 %v244, %v404
    %v513 = vsel %vm376, %v508, 0
    %v516 = vsel %vm376, %v509, 0
    %518 = vmatprep.subr.mxu0 0.0
    %519 = vmatpush1.msra.mxu0 0.0
    %520 = vmatprep.subr.mxu0 0.0
    %521 = vmatpush1.msra.mxu0 0.0
    %522 = vmatprep.subr.mxu0 0.0
    %523 = vmatpush1.msra.mxu0 0.0
    %524 = vmatprep.subr.mxu0 0.0
    %525 = vmatpush1.msra.mxu0 0.0
    %526 = vmatprep.subr.mxu0 0.0
    %527 = vmatpush1.msra.mxu0 0.0
    %528 = vmatprep.subr.mxu0 0.0
    %529 = vmatpush1.msra.mxu0 0.0
    %530 = vmatprep.subr.mxu0 0.0
    %531 = vmatpush1.msra.mxu0 0.0
    %532 = vmatprep.subr.mxu0 0.0
    %533 = vmatpush1.msra.mxu0 0.0
    %534 = vmatprep.subr.mxu0 0.0
    %535 = vmatpush1.msra.mxu0 0.0
    %536 = vmatprep.subr.mxu0 0.0
    %537 = vmatpush1.msra.mxu0 0.0
    %538 = vmatprep.subr.mxu0 0.0
    %539 = vmatpush1.msra.mxu0 0.0
    %540 = vmatprep.subr.mxu0 0.0
    %541 = vmatpush1.msra.mxu0 0.0
    %542 = vmatprep.subr.mxu0 0.0
    %543 = vmatpush1.msra.mxu0 0.0
    %544 = vmatprep.subr.mxu0 0.0
    %545 = vmatpush1.msra.mxu0 0.0
    %546 = vmatprep.subr.mxu0 0.0
    %547 = vmatpush1.msra.mxu0 %v511
    %548 = vmatprep.subr.mxu0 0.0
    %549 = vmatpush1.msra.mxu0 %v510
    %550 = vmatprep.subr.mxu0 0.0
    %551 = vmatpush2.msra.mxu0 0.0
    %552 = vmatprep.subr.mxu0 0.0
    %553 = vmatpush2.msra.mxu0 0.0
    %554 = vmatprep.subr.mxu0 0.0
    %555 = vmatpush2.msra.mxu0 0.0
    %556 = vmatprep.subr.mxu0 0.0
    %557 = vmatpush2.msra.mxu0 0.0
    %558 = vmatprep.subr.mxu0 0.0
    %559 = vmatpush2.msra.mxu0 0.0
    %560 = vmatprep.subr.mxu0 0.0
    %561 = vmatpush2.msra.mxu0 0.0
    %562 = vmatprep.subr.mxu0 0.0
    %563 = vmatpush2.msra.mxu0 0.0
    %564 = vmatprep.subr.mxu0 0.0
    %565 = vmatpush2.msra.mxu0 0.0
    %566 = vmatprep.subr.mxu0 0.0
    %567 = vmatpush2.msra.mxu0 0.0
    %568 = vmatprep.subr.mxu0 0.0
    %569 = vmatpush2.msra.mxu0 0.0
    %570 = vmatprep.subr.mxu0 0.0
    %571 = vmatpush2.msra.mxu0 0.0
    %572 = vmatprep.subr.mxu0 0.0
    %573 = vmatpush2.msra.mxu0 0.0
    %574 = vmatprep.subr.mxu0 0.0
    %575 = vmatpush2.msra.mxu0 0.0
    %576 = vmatprep.subr.mxu0 0.0
    %577 = vmatpush2.msra.mxu0 0.0
    %578 = vmatprep.subr.mxu0 0.0
    %579 = vmatpush2.msra.mxu0 0.0
    %580 = vmatprep.subr.mxu0 0.0
    %581 = vmatpush2.msra.mxu0 0.0
    %582 = vmatprep.mubr.f32.mxu0 0.0
    %583 = vmatmul.mubr.f32.gmra.mxu0 %v513
    %v584 = vpop.f32.mrf.mxu0
    %v585 = vadd.f32 0.0, %v584
    %v586 = vpop.f32.mrf.mxu0
    %587 = vmatprep.mubr.f32.mxu0 0.0
    %588 = vmatmul.mubr.f32.gmra.mxu0 %v516
    %v589 = vpop.f32.mrf.mxu0
    %v590 = vadd.f32 0.0, %v589
    %v591 = vpop.f32.mrf.mxu0
    %592 = vdwg.mxu0
    %v594 = vsel %vm376, %v397, 0
    %v597 = vsel %vm376, %v398, 0
    %599 = vmatprep.subr.mxu0 0.0
    %600 = vmatpush1.msra.mxu0 0.0
    %601 = vmatprep.subr.mxu0 0.0
    %602 = vmatpush1.msra.mxu0 0.0
    %603 = vmatprep.subr.mxu0 0.0
    %604 = vmatpush1.msra.mxu0 0.0
    %605 = vmatprep.subr.mxu0 0.0
    %606 = vmatpush1.msra.mxu0 0.0
    %607 = vmatprep.subr.mxu0 0.0
    %608 = vmatpush1.msra.mxu0 0.0
    %609 = vmatprep.subr.mxu0 0.0
    %610 = vmatpush1.msra.mxu0 0.0
    %611 = vmatprep.subr.mxu0 0.0
    %612 = vmatpush1.msra.mxu0 0.0
    %613 = vmatprep.subr.mxu0 0.0
    %614 = vmatpush1.msra.mxu0 0.0
    %615 = vmatprep.subr.mxu0 0.0
    %616 = vmatpush1.msra.mxu0 0.0
    %617 = vmatprep.subr.mxu0 0.0
    %618 = vmatpush1.msra.mxu0 0.0
    %619 = vmatprep.subr.mxu0 0.0
    %620 = vmatpush1.msra.mxu0 0.0
    %621 = vmatprep.subr.mxu0 0.0
    %622 = vmatpush1.msra.mxu0 0.0
    %623 = vmatprep.subr.mxu0 0.0
    %624 = vmatpush1.msra.mxu0 0.0
    %625 = vmatprep.subr.mxu0 0.0
    %626 = vmatpush1.msra.mxu0 0.0
    %627 = vmatprep.subr.mxu0 0.0
    %628 = vmatpush1.msra.mxu0 %v400
    %629 = vmatprep.subr.mxu0 0.0
    %630 = vmatpush1.msra.mxu0 %v399
    %631 = vmatprep.subr.mxu0 0.0
    %632 = vmatpush2.msra.mxu0 0.0
    %633 = vmatprep.subr.mxu0 0.0
    %634 = vmatpush2.msra.mxu0 0.0
    %635 = vmatprep.subr.mxu0 0.0
    %636 = vmatpush2.msra.mxu0 0.0
    %637 = vmatprep.subr.mxu0 0.0
    %638 = vmatpush2.msra.mxu0 0.0
    %639 = vmatprep.subr.mxu0 0.0
    %640 = vmatpush2.msra.mxu0 0.0
    %641 = vmatprep.subr.mxu0 0.0
    %642 = vmatpush2.msra.mxu0 0.0
    %643 = vmatprep.subr.mxu0 0.0
    %644 = vmatpush2.msra.mxu0 0.0
    %645 = vmatprep.subr.mxu0 0.0
    %646 = vmatpush2.msra.mxu0 0.0
    %647 = vmatprep.subr.mxu0 0.0
    %648 = vmatpush2.msra.mxu0 0.0
    %649 = vmatprep.subr.mxu0 0.0
    %650 = vmatpush2.msra.mxu0 0.0
    %651 = vmatprep.subr.mxu0 0.0
    %652 = vmatpush2.msra.mxu0 0.0
    %653 = vmatprep.subr.mxu0 0.0
    %654 = vmatpush2.msra.mxu0 0.0
    %655 = vmatprep.subr.mxu0 0.0
    %656 = vmatpush2.msra.mxu0 0.0
    %657 = vmatprep.subr.mxu0 0.0
    %658 = vmatpush2.msra.mxu0 0.0
    %659 = vmatprep.subr.mxu0 0.0
    %660 = vmatpush2.msra.mxu0 0.0
    %661 = vmatprep.subr.mxu0 0.0
    %662 = vmatpush2.msra.mxu0 0.0
    %663 = vmatprep.mubr.f32.mxu0 0.0
    %664 = vmatmul.mubr.f32.gmra.mxu0 %v594
    %v665 = vpop.f32.mrf.mxu0
    %v666 = vadd.f32 %v585, %v665
    %v667 = vpop.f32.mrf.mxu0
    %668 = vmatprep.mubr.f32.mxu0 0.0
    %669 = vmatmul.mubr.f32.gmra.mxu0 %v597
    %v670 = vpop.f32.mrf.mxu0
    %v671 = vadd.f32 %v590, %v670
    %v672 = vpop.f32.mrf.mxu0
    %673 = vdwg.mxu0
    %v674 = vlaneseq
    %v675 = vshrl.u32 %v674, 7
    %v676 = vsub.s32 2, %v675
    %v677 = vrot.slane %v46, %v676
    %v678 = vmul.f32 %v267, %v677
    %v679 = vmul.f32 %v268, %v677
    %v681 = vsel %vm49, %v678, 0
    %v684 = vsel %vm49, %v679, 0
    %686 = vmatprep.subr.mxu0 0.0
    %687 = vmatpush1.xpose.msra.mxu0 0.0
    %688 = vmatprep.subr.mxu0 0.0
    %689 = vmatpush1.xpose.msra.mxu0 0.0
    %690 = vmatprep.subr.mxu0 0.0
    %691 = vmatpush1.xpose.msra.mxu0 0.0
    %692 = vmatprep.subr.mxu0 0.0
    %693 = vmatpush1.xpose.msra.mxu0 0.0
    %694 = vmatprep.subr.mxu0 0.0
    %695 = vmatpush1.xpose.msra.mxu0 0.0
    %696 = vmatprep.subr.mxu0 0.0
    %697 = vmatpush1.xpose.msra.mxu0 0.0
    %698 = vmatprep.subr.mxu0 0.0
    %699 = vmatpush1.xpose.msra.mxu0 0.0
    %700 = vmatprep.subr.mxu0 0.0
    %701 = vmatpush1.xpose.msra.mxu0 0.0
    %702 = vmatprep.subr.mxu0 0.0
    %703 = vmatpush1.xpose.msra.mxu0 0.0
    %704 = vmatprep.subr.mxu0 0.0
    %705 = vmatpush1.xpose.msra.mxu0 0.0
    %706 = vmatprep.subr.mxu0 0.0
    %707 = vmatpush1.xpose.msra.mxu0 0.0
    %708 = vmatprep.subr.mxu0 0.0
    %709 = vmatpush1.xpose.msra.mxu0 0.0
    %710 = vmatprep.subr.mxu0 0.0
    %711 = vmatpush1.xpose.msra.mxu0 0.0
    %712 = vmatprep.subr.mxu0 0.0
    %713 = vmatpush1.xpose.msra.mxu0 0.0
    %714 = vmatprep.subr.mxu0 0.0
    %715 = vmatpush1.xpose.msra.mxu0 %v299
    %716 = vmatprep.subr.mxu0 0.0
    %717 = vmatpush1.xpose.msra.mxu0 %v296
    %718 = vmatprep.subr.mxu0 0.0
    %719 = vmatpush2.xpose.msra.mxu0 0.0
    %720 = vmatprep.subr.mxu0 0.0
    %721 = vmatpush2.xpose.msra.mxu0 0.0
    %722 = vmatprep.subr.mxu0 0.0
    %723 = vmatpush2.xpose.msra.mxu0 0.0
    %724 = vmatprep.subr.mxu0 0.0
    %725 = vmatpush2.xpose.msra.mxu0 0.0
    %726 = vmatprep.subr.mxu0 0.0
    %727 = vmatpush2.xpose.msra.mxu0 0.0
    %728 = vmatprep.subr.mxu0 0.0
    %729 = vmatpush2.xpose.msra.mxu0 0.0
    %730 = vmatprep.subr.mxu0 0.0
    %731 = vmatpush2.xpose.msra.mxu0 0.0
    %732 = vmatprep.subr.mxu0 0.0
    %733 = vmatpush2.xpose.msra.mxu0 0.0
    %734 = vmatprep.subr.mxu0 0.0
    %735 = vmatpush2.xpose.msra.mxu0 0.0
    %736 = vmatprep.subr.mxu0 0.0
    %737 = vmatpush2.xpose.msra.mxu0 0.0
    %738 = vmatprep.subr.mxu0 0.0
    %739 = vmatpush2.xpose.msra.mxu0 0.0
    %740 = vmatprep.subr.mxu0 0.0
    %741 = vmatpush2.xpose.msra.mxu0 0.0
    %742 = vmatprep.subr.mxu0 0.0
    %743 = vmatpush2.xpose.msra.mxu0 0.0
    %744 = vmatprep.subr.mxu0 0.0
    %745 = vmatpush2.xpose.msra.mxu0 0.0
    %746 = vmatprep.subr.mxu0 0.0
    %747 = vmatpush2.xpose.msra.mxu0 0.0
    %748 = vmatprep.subr.mxu0 0.0
    %749 = vmatpush2.xpose.msra.mxu0 0.0
    %750 = vmatprep.mubr.f32.mxu0 0.0
    %751 = vmatmul.mubr.f32.gmra.mxu0 %v681
    %v752 = vpop.f32.mrf.mxu0
    %v753 = vadd.f32 %v44, %v752
    %v754 = vpop.f32.mrf.mxu0
    %755 = vmatprep.mubr.f32.mxu0 0.0
    %756 = vmatmul.mubr.f32.gmra.mxu0 %v684
    %v757 = vpop.f32.mrf.mxu0
    %v758 = vadd.f32 %v45, %v757
    %v759 = vpop.f32.mrf.mxu0
    %760 = vdwg.mxu0
    %v761 = vsel %vm376, %v753, -inf
    %762 = vmax.xlane.f32.xlu0 %v761
    %v763 = vpop.xlane.xlu0 %762
    %v764 = vsel %vm376, %v758, -inf
    %765 = vmax.xlane.f32.xlu0 %v764
    %v766 = vpop.xlane.xlu0 %765
    %v767 = vsub.f32 %v753, %v763
    %v768 = vsub.f32 %v758, %v766
    %v769 = vmul.f32 %v767, 1.442695
    %v770 = vpow.pop %v769
    %v771 = vmul.f32 %v768, 1.442695
    %v772 = vpow.pop %v771
    %v773 = vsel %vm376, %v770, 0.0
    %774 = vadd.xlane.f32.xlu0 %v773
    %v775 = vpop.xlane.xlu0 %774
    %v776 = vsel %vm376, %v772, 0.0
    %777 = vadd.xlane.f32.xlu0 %v776
    %v778 = vpop.xlane.xlu0 %777
    %v779 = vrcp.pop %v775
    %v780 = vrcp.pop %v778
    %v781 = vmul.f32 %v770, %v779
    %v782 = vmul.f32 %v772, %v780
    %v783 = vmul.f32 %v239, %v677
    %v784 = vmul.f32 %v244, %v677
    %v786 = vsel %vm376, %v781, 0
    %v789 = vsel %vm376, %v782, 0
    %791 = vmatprep.subr.mxu0 0.0
    %792 = vmatpush1.msra.mxu0 0.0
    %793 = vmatprep.subr.mxu0 0.0
    %794 = vmatpush1.msra.mxu0 0.0
    %795 = vmatprep.subr.mxu0 0.0
    %796 = vmatpush1.msra.mxu0 0.0
    %797 = vmatprep.subr.mxu0 0.0
    %798 = vmatpush1.msra.mxu0 0.0
    %799 = vmatprep.subr.mxu0 0.0
    %800 = vmatpush1.msra.mxu0 0.0
    %801 = vmatprep.subr.mxu0 0.0
    %802 = vmatpush1.msra.mxu0 0.0
    %803 = vmatprep.subr.mxu0 0.0
    %804 = vmatpush1.msra.mxu0 0.0
    %805 = vmatprep.subr.mxu0 0.0
    %806 = vmatpush1.msra.mxu0 0.0
    %807 = vmatprep.subr.mxu0 0.0
    %808 = vmatpush1.msra.mxu0 0.0
    %809 = vmatprep.subr.mxu0 0.0
    %810 = vmatpush1.msra.mxu0 0.0
    %811 = vmatprep.subr.mxu0 0.0
    %812 = vmatpush1.msra.mxu0 0.0
    %813 = vmatprep.subr.mxu0 0.0
    %814 = vmatpush1.msra.mxu0 0.0
    %815 = vmatprep.subr.mxu0 0.0
    %816 = vmatpush1.msra.mxu0 0.0
    %817 = vmatprep.subr.mxu0 0.0
    %818 = vmatpush1.msra.mxu0 0.0
    %819 = vmatprep.subr.mxu0 0.0
    %820 = vmatpush1.msra.mxu0 %v784
    %821 = vmatprep.subr.mxu0 0.0
    %822 = vmatpush1.msra.mxu0 %v783
    %823 = vmatprep.subr.mxu0 0.0
    %824 = vmatpush2.msra.mxu0 0.0
    %825 = vmatprep.subr.mxu0 0.0
    %826 = vmatpush2.msra.mxu0 0.0
    %827 = vmatprep.subr.mxu0 0.0
    %828 = vmatpush2.msra.mxu0 0.0
    %829 = vmatprep.subr.mxu0 0.0
    %830 = vmatpush2.msra.mxu0 0.0
    %831 = vmatprep.subr.mxu0 0.0
    %832 = vmatpush2.msra.mxu0 0.0
    %833 = vmatprep.subr.mxu0 0.0
    %834 = vmatpush2.msra.mxu0 0.0
    %835 = vmatprep.subr.mxu0 0.0
    %836 = vmatpush2.msra.mxu0 0.0
    %837 = vmatprep.subr.mxu0 0.0
    %838 = vmatpush2.msra.mxu0 0.0
    %839 = vmatprep.subr.mxu0 0.0
    %840 = vmatpush2.msra.mxu0 0.0
    %841 = vmatprep.subr.mxu0 0.0
    %842 = vmatpush2.msra.mxu0 0.0
    %843 = vmatprep.subr.mxu0 0.0
    %844 = vmatpush2.msra.mxu0 0.0
    %845 = vmatprep.subr.mxu0 0.0
    %846 = vmatpush2.msra.mxu0 0.0
    %847 = vmatprep.subr.mxu0 0.0
    %848 = vmatpush2.msra.mxu0 0.0
    %849 = vmatprep.subr.mxu0 0.0
    %850 = vmatpush2.msra.mxu0 0.0
    %851 = vmatprep.subr.mxu0 0.0
    %852 = vmatpush2.msra.mxu0 0.0
    %853 = vmatprep.subr.mxu0 0.0
    %854 = vmatpush2.msra.mxu0 0.0
    %855 = vmatprep.mubr.f32.mxu0 0.0
    %856 = vmatmul.mubr.f32.gmra.mxu0 %v786
    %v857 = vpop.f32.mrf.mxu0
    %v858 = vadd.f32 0.0, %v857
    %v859 = vpop.f32.mrf.mxu0
    %860 = vmatprep.mubr.f32.mxu0 0.0
    %861 = vmatmul.mubr.f32.gmra.mxu0 %v789
    %v862 = vpop.f32.mrf.mxu0
    %v863 = vadd.f32 0.0, %v862
    %v864 = vpop.f32.mrf.mxu0
    %865 = vdwg.mxu0
    %v866 = vadd.f32 %v666, %v858
    %v867 = vadd.f32 %v671, %v863
    %v868 = vlaneseq
    %v869 = vshrl.u32 %v868, 7
    %v870 = vsub.s32 3, %v869
    %v871 = vrot.slane %v46, %v870
    %v872 = vmul.f32 %v267, %v871
    %v873 = vmul.f32 %v268, %v871
    %v875 = vsel %vm49, %v872, 0
    %v878 = vsel %vm49, %v873, 0
    %880 = vmatprep.subr.mxu0 0.0
    %881 = vmatpush1.xpose.msra.mxu0 0.0
    %882 = vmatprep.subr.mxu0 0.0
    %883 = vmatpush1.xpose.msra.mxu0 0.0
    %884 = vmatprep.subr.mxu0 0.0
    %885 = vmatpush1.xpose.msra.mxu0 0.0
    %886 = vmatprep.subr.mxu0 0.0
    %887 = vmatpush1.xpose.msra.mxu0 0.0
    %888 = vmatprep.subr.mxu0 0.0
    %889 = vmatpush1.xpose.msra.mxu0 0.0
    %890 = vmatprep.subr.mxu0 0.0
    %891 = vmatpush1.xpose.msra.mxu0 0.0
    %892 = vmatprep.subr.mxu0 0.0
    %893 = vmatpush1.xpose.msra.mxu0 0.0
    %894 = vmatprep.subr.mxu0 0.0
    %895 = vmatpush1.xpose.msra.mxu0 0.0
    %896 = vmatprep.subr.mxu0 0.0
    %897 = vmatpush1.xpose.msra.mxu0 0.0
    %898 = vmatprep.subr.mxu0 0.0
    %899 = vmatpush1.xpose.msra.mxu0 0.0
    %900 = vmatprep.subr.mxu0 0.0
    %901 = vmatpush1.xpose.msra.mxu0 0.0
    %902 = vmatprep.subr.mxu0 0.0
    %903 = vmatpush1.xpose.msra.mxu0 0.0
    %904 = vmatprep.subr.mxu0 0.0
    %905 = vmatpush1.xpose.msra.mxu0 0.0
    %906 = vmatprep.subr.mxu0 0.0
    %907 = vmatpush1.xpose.msra.mxu0 0.0
    %908 = vmatprep.subr.mxu0 0.0
    %909 = vmatpush1.xpose.msra.mxu0 %v299
    %910 = vmatprep.subr.mxu0 0.0
    %911 = vmatpush1.xpose.msra.mxu0 %v296
    %912 = vmatprep.subr.mxu0 0.0
    %913 = vmatpush2.xpose.msra.mxu0 0.0
    %914 = vmatprep.subr.mxu0 0.0
    %915 = vmatpush2.xpose.msra.mxu0 0.0
    %916 = vmatprep.subr.mxu0 0.0
    %917 = vmatpush2.xpose.msra.mxu0 0.0
    %918 = vmatprep.subr.mxu0 0.0
    %919 = vmatpush2.xpose.msra.mxu0 0.0
    %920 = vmatprep.subr.mxu0 0.0
    %921 = vmatpush2.xpose.msra.mxu0 0.0
    %922 = vmatprep.subr.mxu0 0.0
    %923 = vmatpush2.xpose.msra.mxu0 0.0
    %924 = vmatprep.subr.mxu0 0.0
    %925 = vmatpush2.xpose.msra.mxu0 0.0
    %926 = vmatprep.subr.mxu0 0.0
    %927 = vmatpush2.xpose.msra.mxu0 0.0
    %928 = vmatprep.subr.mxu0 0.0
    %929 = vmatpush2.xpose.msra.mxu0 0.0
    %930 = vmatprep.subr.mxu0 0.0
    %931 = vmatpush2.xpose.msra.mxu0 0.0
    %932 = vmatprep.subr.mxu0 0.0
    %933 = vmatpush2.xpose.msra.mxu0 0.0
    %934 = vmatprep.subr.mxu0 0.0
    %935 = vmatpush2.xpose.msra.mxu0 0.0
    %936 = vmatprep.subr.mxu0 0.0
    %937 = vmatpush2.xpose.msra.mxu0 0.0
    %938 = vmatprep.subr.mxu0 0.0
    %939 = vmatpush2.xpose.msra.mxu0 0.0
    %940 = vmatprep.subr.mxu0 0.0
    %941 = vmatpush2.xpose.msra.mxu0 0.0
    %942 = vmatprep.subr.mxu0 0.0
    %943 = vmatpush2.xpose.msra.mxu0 0.0
    %944 = vmatprep.mubr.f32.mxu0 0.0
    %945 = vmatmul.mubr.f32.gmra.mxu0 %v875
    %v946 = vpop.f32.mrf.mxu0
    %v947 = vadd.f32 %v44, %v946
    %v948 = vpop.f32.mrf.mxu0
    %949 = vmatprep.mubr.f32.mxu0 0.0
    %950 = vmatmul.mubr.f32.gmra.mxu0 %v878
    %v951 = vpop.f32.mrf.mxu0
    %v952 = vadd.f32 %v45, %v951
    %v953 = vpop.f32.mrf.mxu0
    %954 = vdwg.mxu0
    %v955 = vsel %vm376, %v947, -inf
    %956 = vmax.xlane.f32.xlu0 %v955
    %v957 = vpop.xlane.xlu0 %956
    %v958 = vsel %vm376, %v952, -inf
    %959 = vmax.xlane.f32.xlu0 %v958
    %v960 = vpop.xlane.xlu0 %959
    %v961 = vsub.f32 %v947, %v957
    %v962 = vsub.f32 %v952, %v960
    %v963 = vmul.f32 %v961, 1.442695
    %v964 = vpow.pop %v963
    %v965 = vmul.f32 %v962, 1.442695
    %v966 = vpow.pop %v965
    %v967 = vsel %vm376, %v964, 0.0
    %968 = vadd.xlane.f32.xlu0 %v967
    %v969 = vpop.xlane.xlu0 %968
    %v970 = vsel %vm376, %v966, 0.0
    %971 = vadd.xlane.f32.xlu0 %v970
    %v972 = vpop.xlane.xlu0 %971
    %v973 = vrcp.pop %v969
    %v974 = vrcp.pop %v972
    %v975 = vmul.f32 %v964, %v973
    %v976 = vmul.f32 %v966, %v974
    %v977 = vmul.f32 %v239, %v871
    %v978 = vmul.f32 %v244, %v871
    %v980 = vsel %vm376, %v975, 0
    %v983 = vsel %vm376, %v976, 0
    %985 = vmatprep.subr.mxu0 0.0
    %986 = vmatpush1.msra.mxu0 0.0
    %987 = vmatprep.subr.mxu0 0.0
    %988 = vmatpush1.msra.mxu0 0.0
    %989 = vmatprep.subr.mxu0 0.0
    %990 = vmatpush1.msra.mxu0 0.0
    %991 = vmatprep.subr.mxu0 0.0
    %992 = vmatpush1.msra.mxu0 0.0
    %993 = vmatprep.subr.mxu0 0.0
    %994 = vmatpush1.msra.mxu0 0.0
    %995 = vmatprep.subr.mxu0 0.0
    %996 = vmatpush1.msra.mxu0 0.0
    %997 = vmatprep.subr.mxu0 0.0
    %998 = vmatpush1.msra.mxu0 0.0
    %999 = vmatprep.subr.mxu0 0.0
    %1000 = vmatpush1.msra.mxu0 0.0
    %1001 = vmatprep.subr.mxu0 0.0
    %1002 = vmatpush1.msra.mxu0 0.0
    %1003 = vmatprep.subr.mxu0 0.0
    %1004 = vmatpush1.msra.mxu0 0.0
    %1005 = vmatprep.subr.mxu0 0.0
    %1006 = vmatpush1.msra.mxu0 0.0
    %1007 = vmatprep.subr.mxu0 0.0
    %1008 = vmatpush1.msra.mxu0 0.0
    %1009 = vmatprep.subr.mxu0 0.0
    %1010 = vmatpush1.msra.mxu0 0.0
    %1011 = vmatprep.subr.mxu0 0.0
    %1012 = vmatpush1.msra.mxu0 0.0
    %1013 = vmatprep.subr.mxu0 0.0
    %1014 = vmatpush1.msra.mxu0 %v978
    %1015 = vmatprep.subr.mxu0 0.0
    %1016 = vmatpush1.msra.mxu0 %v977
    %1017 = vmatprep.subr.mxu0 0.0
    %1018 = vmatpush2.msra.mxu0 0.0
    %1019 = vmatprep.subr.mxu0 0.0
    %1020 = vmatpush2.msra.mxu0 0.0
    %1021 = vmatprep.subr.mxu0 0.0
    %1022 = vmatpush2.msra.mxu0 0.0
    %1023 = vmatprep.subr.mxu0 0.0
    %1024 = vmatpush2.msra.mxu0 0.0
    %1025 = vmatprep.subr.mxu0 0.0
    %1026 = vmatpush2.msra.mxu0 0.0
    %1027 = vmatprep.subr.mxu0 0.0
    %1028 = vmatpush2.msra.mxu0 0.0
    %1029 = vmatprep.subr.mxu0 0.0
    %1030 = vmatpush2.msra.mxu0 0.0
    %1031 = vmatprep.subr.mxu0 0.0
    %1032 = vmatpush2.msra.mxu0 0.0
    %1033 = vmatprep.subr.mxu0 0.0
    %1034 = vmatpush2.msra.mxu0 0.0
    %1035 = vmatprep.subr.mxu0 0.0
    %1036 = vmatpush2.msra.mxu0 0.0
    %1037 = vmatprep.subr.mxu0 0.0
    %1038 = vmatpush2.msra.mxu0 0.0
    %1039 = vmatprep.subr.mxu0 0.0
    %1040 = vmatpush2.msra.mxu0 0.0
    %1041 = vmatprep.subr.mxu0 0.0
    %1042 = vmatpush2.msra.mxu0 0.0
    %1043 = vmatprep.subr.mxu0 0.0
    %1044 = vmatpush2.msra.mxu0 0.0
    %1045 = vmatprep.subr.mxu0 0.0
    %1046 = vmatpush2.msra.mxu0 0.0
    %1047 = vmatprep.subr.mxu0 0.0
    %1048 = vmatpush2.msra.mxu0 0.0
    %1049 = vmatprep.mubr.f32.mxu0 0.0
    %1050 = vmatmul.mubr.f32.gmra.mxu0 %v980
    %v1051 = vpop.f32.mrf.mxu0
    %v1052 = vadd.f32 0.0, %v1051
    %v1053 = vpop.f32.mrf.mxu0
    %1054 = vmatprep.mubr.f32.mxu0 0.0
    %1055 = vmatmul.mubr.f32.gmra.mxu0 %v983
    %v1056 = vpop.f32.mrf.mxu0
    %v1057 = vadd.f32 0.0, %v1056
    %v1058 = vpop.f32.mrf.mxu0
    %1059 = vdwg.mxu0
    %v1060 = vadd.f32 %v866, %v1052
    %v1061 = vadd.f32 %v867, %v1057
    %v1062 = vld [vmem:[%s2] sm:$0xff]
    %v1063 = vld [vmem:[%s2 + $0x8] sm:$0xff]
    %v1064 = vld [vmem:[%s2 + $0x10] sm:$0xff]
    %v1065 = vld [vmem:[%s2 + $0x18] sm:$0xff]
    %v1066 = vld [vmem:[%s2 + $0x20] sm:$0xff]
    %v1067 = vld [vmem:[%s2 + $0x28] sm:$0xff]
    %v1068 = vld [vmem:[%s2 + $0x30] sm:$0xff]
    %v1069 = vld [vmem:[%s2 + $0x38] sm:$0xff]
    %v1071 = vsel %vm49, %v1060, 0
    %v1074 = vsel %vm49, %v1061, 0
    %1076 = vmatprep.subr.mxu0 0.0
    %1077 = vmatpush1.msra.mxu0 0.0
    %1078 = vmatprep.subr.mxu0 0.0
    %1079 = vmatpush1.msra.mxu0 0.0
    %1080 = vmatprep.subr.mxu0 0.0
    %1081 = vmatpush1.msra.mxu0 0.0
    %1082 = vmatprep.subr.mxu0 0.0
    %1083 = vmatpush1.msra.mxu0 0.0
    %1084 = vmatprep.subr.mxu0 0.0
    %1085 = vmatpush1.msra.mxu0 0.0
    %1086 = vmatprep.subr.mxu0 0.0
    %1087 = vmatpush1.msra.mxu0 0.0
    %1088 = vmatprep.subr.mxu0 0.0
    %1089 = vmatpush1.msra.mxu0 0.0
    %1090 = vmatprep.subr.mxu0 0.0
    %1091 = vmatpush1.msra.mxu0 0.0
    %1092 = vmatprep.subr.mxu0 0.0
    %1093 = vmatpush1.msra.mxu0 %v1069
    %1094 = vmatprep.subr.mxu0 0.0
    %1095 = vmatpush1.msra.mxu0 %v1068
    %1096 = vmatprep.subr.mxu0 0.0
    %1097 = vmatpush1.msra.mxu0 %v1067
    %1098 = vmatprep.subr.mxu0 0.0
    %1099 = vmatpush1.msra.mxu0 %v1066
    %1100 = vmatprep.subr.mxu0 0.0
    %1101 = vmatpush1.msra.mxu0 %v1065
    %1102 = vmatprep.subr.mxu0 0.0
    %1103 = vmatpush1.msra.mxu0 %v1064
    %1104 = vmatprep.subr.mxu0 0.0
    %1105 = vmatpush1.msra.mxu0 %v1063
    %1106 = vmatprep.subr.mxu0 0.0
    %1107 = vmatpush1.msra.mxu0 %v1062
    %1108 = vmatprep.subr.mxu0 0.0
    %1109 = vmatpush2.msra.mxu0 0.0
    %1110 = vmatprep.subr.mxu0 0.0
    %1111 = vmatpush2.msra.mxu0 0.0
    %1112 = vmatprep.subr.mxu0 0.0
    %1113 = vmatpush2.msra.mxu0 0.0
    %1114 = vmatprep.subr.mxu0 0.0
    %1115 = vmatpush2.msra.mxu0 0.0
    %1116 = vmatprep.subr.mxu0 0.0
    %1117 = vmatpush2.msra.mxu0 0.0
    %1118 = vmatprep.subr.mxu0 0.0
    %1119 = vmatpush2.msra.mxu0 0.0
    %1120 = vmatprep.subr.mxu0 0.0
    %1121 = vmatpush2.msra.mxu0 0.0
    %1122 = vmatprep.subr.mxu0 0.0
    %1123 = vmatpush2.msra.mxu0 0.0
    %1124 = vmatprep.subr.mxu0 0.0
    %1125 = vmatpush2.msra.mxu0 0.0
    %1126 = vmatprep.subr.mxu0 0.0
    %1127 = vmatpush2.msra.mxu0 0.0
    %1128 = vmatprep.subr.mxu0 0.0
    %1129 = vmatpush2.msra.mxu0 0.0
    %1130 = vmatprep.subr.mxu0 0.0
    %1131 = vmatpush2.msra.mxu0 0.0
    %1132 = vmatprep.subr.mxu0 0.0
    %1133 = vmatpush2.msra.mxu0 0.0
    %1134 = vmatprep.subr.mxu0 0.0
    %1135 = vmatpush2.msra.mxu0 0.0
    %1136 = vmatprep.subr.mxu0 0.0
    %1137 = vmatpush2.msra.mxu0 0.0
    %1138 = vmatprep.subr.mxu0 0.0
    %1139 = vmatpush2.msra.mxu0 0.0
    %1140 = vmatprep.mubr.f32.mxu0 0.0
    %1141 = vmatmul.mubr.f32.gmra.mxu0 %v1071
    %v1142 = vpop.f32.mrf.mxu0
    %v1143 = vadd.f32 0.0, %v1142
    %v1144 = vpop.f32.mrf.mxu0
    %1145 = vmatprep.mubr.f32.mxu0 0.0
    %1146 = vmatmul.mubr.f32.gmra.mxu0 %v1074
    %v1147 = vpop.f32.mrf.mxu0
    %v1148 = vadd.f32 0.0, %v1147
    %v1149 = vpop.f32.mrf.mxu0
    %1150 = vdwg.mxu0
    %v1151 = vadd.f32 %v38, %v1143
    %v1152 = vadd.f32 %v39, %v1148
    %v1153 = vmul.f32 %v1151, %v1151
    %v1154 = vmul.f32 %v1152, %v1152
    %v1155 = vsel %vm49, %v1153, 0.0
    %1156 = vadd.xlane.f32.xlu0 %v1155
    %v1157 = vpop.xlane.xlu0 %1156
    %v1158 = vsel %vm49, %v1154, 0.0
    %1159 = vadd.xlane.f32.xlu0 %v1158
    %v1160 = vpop.xlane.xlu0 %1159
    %v1161 = vmul.f32 %v1157, %v56
    %v1162 = vmul.f32 %v1160, %v56
    %v1163 = vadd.f32 %v1161, 1e-05
    %v1164 = vadd.f32 %v1162, 1e-05
    %v1165 = vrsqrt.pop %v1163
    %v1166 = vrsqrt.pop %v1164
    %v1167 = vmul.f32 %v1151, %v1165
    %v1168 = vmul.f32 %v1152, %v1166
    %v1169 = vld [vmem:[#allocation2] sm:$0xff]
    %v1170 = vld [vmem:[#allocation2 + $0x8] sm:$0xff]
    %v1171 = vld [vmem:[#allocation2 + $0x10] sm:$0xff]
    %v1172 = vld [vmem:[#allocation2 + $0x18] sm:$0xff]
    %v1173 = vld [vmem:[#allocation2 + $0x20] sm:$0xff]
    %v1174 = vld [vmem:[#allocation2 + $0x28] sm:$0xff]
    %v1175 = vld [vmem:[#allocation2 + $0x30] sm:$0xff]
    %v1176 = vld [vmem:[#allocation2 + $0x38] sm:$0xff]
    %v1177 = vld [vmem:[#allocation2 + $0x40] sm:$0xff]
    %v1178 = vld [vmem:[#allocation2 + $0x48] sm:$0xff]
    %v1179 = vld [vmem:[#allocation2 + $0x50] sm:$0xff]
    %v1180 = vld [vmem:[#allocation2 + $0x58] sm:$0xff]
    %v1181 = vld [vmem:[#allocation2 + $0x60] sm:$0xff]
    %v1182 = vld [vmem:[#allocation2 + $0x68] sm:$0xff]
    %v1183 = vld [vmem:[#allocation2 + $0x70] sm:$0xff]
    %v1184 = vld [vmem:[#allocation2 + $0x78] sm:$0xff]
    %v1185 = vld [vmem:[#allocation2 + $0x80] sm:$0xff]
    %v1186 = vld [vmem:[#allocation2 + $0x88] sm:$0xff]
    %v1187 = vld [vmem:[#allocation2 + $0x90] sm:$0xff]
    %v1188 = vld [vmem:[#allocation2 + $0x98] sm:$0xff]
    %v1189 = vld [vmem:[#allocation2 + $0xa0] sm:$0xff]
    %v1190 = vld [vmem:[#allocation2 + $0xa8] sm:$0xff]
    %v1191 = vld [vmem:[#allocation2 + $0xb0] sm:$0xff]
    %v1192 = vld [vmem:[#allocation2 + $0xb8] sm:$0xff]
    %v1194 = vsel %vm49, %v1167, 0
    %v1197 = vsel %vm49, %v1168, 0
    %1199 = vmatprep.subr.mxu0 0.0
    %1200 = vmatpush1.msra.mxu0 0.0
    %1201 = vmatprep.subr.mxu0 0.0
    %1202 = vmatpush1.msra.mxu0 0.0
    %1203 = vmatprep.subr.mxu0 0.0
    %1204 = vmatpush1.msra.mxu0 0.0
    %1205 = vmatprep.subr.mxu0 0.0
    %1206 = vmatpush1.msra.mxu0 0.0
    %1207 = vmatprep.subr.mxu0 0.0
    %1208 = vmatpush1.msra.mxu0 0.0
    %1209 = vmatprep.subr.mxu0 0.0
    %1210 = vmatpush1.msra.mxu0 0.0
    %1211 = vmatprep.subr.mxu0 0.0
    %1212 = vmatpush1.msra.mxu0 0.0
    %1213 = vmatprep.subr.mxu0 0.0
    %1214 = vmatpush1.msra.mxu0 0.0
    %1215 = vmatprep.subr.mxu0 %v1191
    %1216 = vmatpush1.msra.mxu0 %v1190
    %1217 = vmatprep.subr.mxu0 %v1188
    %1218 = vmatpush1.msra.mxu0 %v1187
    %1219 = vmatprep.subr.mxu0 %v1185
    %1220 = vmatpush1.msra.mxu0 %v1184
    %1221 = vmatprep.subr.mxu0 %v1182
    %1222 = vmatpush1.msra.mxu0 %v1181
    %1223 = vmatprep.subr.mxu0 %v1179
    %1224 = vmatpush1.msra.mxu0 %v1178
    %1225 = vmatprep.subr.mxu0 %v1176
    %1226 = vmatpush1.msra.mxu0 %v1175
    %1227 = vmatprep.subr.mxu0 %v1173
    %1228 = vmatpush1.msra.mxu0 %v1172
    %1229 = vmatprep.subr.mxu0 %v1170
    %1230 = vmatpush1.msra.mxu0 %v1169
    %1231 = vmatprep.subr.mxu0 0.0
    %1232 = vmatpush2.msra.mxu0 0.0
    %1233 = vmatprep.subr.mxu0 0.0
    %1234 = vmatpush2.msra.mxu0 0.0
    %1235 = vmatprep.subr.mxu0 0.0
    %1236 = vmatpush2.msra.mxu0 0.0
    %1237 = vmatprep.subr.mxu0 0.0
    %1238 = vmatpush2.msra.mxu0 0.0
    %1239 = vmatprep.subr.mxu0 0.0
    %1240 = vmatpush2.msra.mxu0 0.0
    %1241 = vmatprep.subr.mxu0 0.0
    %1242 = vmatpush2.msra.mxu0 0.0
    %1243 = vmatprep.subr.mxu0 0.0
    %1244 = vmatpush2.msra.mxu0 0.0
    %1245 = vmatprep.subr.mxu0 0.0
    %1246 = vmatpush2.msra.mxu0 0.0
    %1247 = vmatprep.subr.mxu0 0.0
    %1248 = vmatpush2.msra.mxu0 0.0
    %1249 = vmatprep.subr.mxu0 0.0
    %1250 = vmatpush2.msra.mxu0 0.0
    %1251 = vmatprep.subr.mxu0 0.0
    %1252 = vmatpush2.msra.mxu0 0.0
    %1253 = vmatprep.subr.mxu0 0.0
    %1254 = vmatpush2.msra.mxu0 0.0
    %1255 = vmatprep.subr.mxu0 0.0
    %1256 = vmatpush2.msra.mxu0 0.0
    %1257 = vmatprep.subr.mxu0 0.0
    %1258 = vmatpush2.msra.mxu0 0.0
    %1259 = vmatprep.subr.mxu0 0.0
    %1260 = vmatpush2.msra.mxu0 0.0
    %1261 = vmatprep.subr.mxu0 0.0
    %1262 = vmatpush2.msra.mxu0 0.0
    %1263 = vmatprep.mubr.f32.mxu0 0.0
    %1264 = vmatmul.mubr.f32.gmra.mxu0 %v1194
    %v1265 = vpop.f32.mrf.mxu0
    %v1266 = vadd.f32 0.0, %v1265
    %v1267 = vpop.f32.mrf.mxu0
    %v1268 = vadd.f32 0.0, %v1267
    %1269 = vmatprep.mubr.f32.mxu0 0.0
    %1270 = vmatmul.mubr.f32.gmra.mxu0 %v1197
    %v1271 = vpop.f32.mrf.mxu0
    %v1272 = vadd.f32 0.0, %v1271
    %v1273 = vpop.f32.mrf.mxu0
    %v1274 = vadd.f32 0.0, %v1273
    %1275 = vdwg.mxu0
    %1276 = vmatprep.subr.mxu0 0.0
    %1277 = vmatpush1.msra.mxu0 0.0
    %1278 = vmatprep.subr.mxu0 0.0
    %1279 = vmatpush1.msra.mxu0 0.0
    %1280 = vmatprep.subr.mxu0 0.0
    %1281 = vmatpush1.msra.mxu0 0.0
    %1282 = vmatprep.subr.mxu0 0.0
    %1283 = vmatpush1.msra.mxu0 0.0
    %1284 = vmatprep.subr.mxu0 0.0
    %1285 = vmatpush1.msra.mxu0 0.0
    %1286 = vmatprep.subr.mxu0 0.0
    %1287 = vmatpush1.msra.mxu0 0.0
    %1288 = vmatprep.subr.mxu0 0.0
    %1289 = vmatpush1.msra.mxu0 0.0
    %1290 = vmatprep.subr.mxu0 0.0
    %1291 = vmatpush1.msra.mxu0 0.0
    %1292 = vmatprep.subr.mxu0 0.0
    %1293 = vmatpush1.msra.mxu0 %v1192
    %1294 = vmatprep.subr.mxu0 0.0
    %1295 = vmatpush1.msra.mxu0 %v1189
    %1296 = vmatprep.subr.mxu0 0.0
    %1297 = vmatpush1.msra.mxu0 %v1186
    %1298 = vmatprep.subr.mxu0 0.0
    %1299 = vmatpush1.msra.mxu0 %v1183
    %1300 = vmatprep.subr.mxu0 0.0
    %1301 = vmatpush1.msra.mxu0 %v1180
    %1302 = vmatprep.subr.mxu0 0.0
    %1303 = vmatpush1.msra.mxu0 %v1177
    %1304 = vmatprep.subr.mxu0 0.0
    %1305 = vmatpush1.msra.mxu0 %v1174
    %1306 = vmatprep.subr.mxu0 0.0
    %1307 = vmatpush1.msra.mxu0 %v1171
    %1308 = vmatprep.subr.mxu0 0.0
    %1309 = vmatpush2.msra.mxu0 0.0
    %1310 = vmatprep.subr.mxu0 0.0
    %1311 = vmatpush2.msra.mxu0 0.0
    %1312 = vmatprep.subr.mxu0 0.0
    %1313 = vmatpush2.msra.mxu0 0.0
    %1314 = vmatprep.subr.mxu0 0.0
    %1315 = vmatpush2.msra.mxu0 0.0
    %1316 = vmatprep.subr.mxu0 0.0
    %1317 = vmatpush2.msra.mxu0 0.0
    %1318 = vmatprep.subr.mxu0 0.0
    %1319 = vmatpush2.msra.mxu0 0.0
    %1320 = vmatprep.subr.mxu0 0.0
    %1321 = vmatpush2.msra.mxu0 0.0
    %1322 = vmatprep.subr.mxu0 0.0
    %1323 = vmatpush2.msra.mxu0 0.0
    %1324 = vmatprep.subr.mxu0 0.0
    %1325 = vmatpush2.msra.mxu0 0.0
    %1326 = vmatprep.subr.mxu0 0.0
    %1327 = vmatpush2.msra.mxu0 0.0
    %1328 = vmatprep.subr.mxu0 0.0
    %1329 = vmatpush2.msra.mxu0 0.0
    %1330 = vmatprep.subr.mxu0 0.0
    %1331 = vmatpush2.msra.mxu0 0.0
    %1332 = vmatprep.subr.mxu0 0.0
    %1333 = vmatpush2.msra.mxu0 0.0
    %1334 = vmatprep.subr.mxu0 0.0
    %1335 = vmatpush2.msra.mxu0 0.0
    %1336 = vmatprep.subr.mxu0 0.0
    %1337 = vmatpush2.msra.mxu0 0.0
    %1338 = vmatprep.subr.mxu0 0.0
    %1339 = vmatpush2.msra.mxu0 0.0
    %1340 = vmatprep.mubr.f32.mxu0 0.0
    %1341 = vmatmul.mubr.f32.gmra.mxu0 %v1194
    %v1342 = vpop.f32.mrf.mxu0
    %v1343 = vadd.f32 0.0, %v1342
    %v1344 = vpop.f32.mrf.mxu0
    %1345 = vmatprep.mubr.f32.mxu0 0.0
    %1346 = vmatmul.mubr.f32.gmra.mxu0 %v1197
    %v1347 = vpop.f32.mrf.mxu0
    %v1348 = vadd.f32 0.0, %v1347
    %v1349 = vpop.f32.mrf.mxu0
    %1350 = vdwg.mxu0
    %v1351 = vsub.f32 0.0, %v1266
    %v1352 = vsub.f32 0.0, %v1268
    %v1353 = vsub.f32 0.0, %v1272
    %v1354 = vsub.f32 0.0, %v1274
    %v1355 = vmul.f32 %v1351, 1.442695
    %v1356 = vpow.pop %v1355
    %v1357 = vmul.f32 %v1352, 1.442695
    %v1358 = vpow.pop %v1357
    %v1359 = vmul.f32 %v1353, 1.442695
    %v1360 = vpow.pop %v1359
    %v1361 = vmul.f32 %v1354, 1.442695
    %v1362 = vpow.pop %v1361
    %v1363 = vadd.f32 %v1356, 1.0
    %v1364 = vadd.f32 %v1358, 1.0
    %v1365 = vadd.f32 %v1360, 1.0
    %v1366 = vadd.f32 %v1362, 1.0
    %v1367 = vrcp.pop %v1363
    %v1368 = vrcp.pop %v1364
    %v1369 = vrcp.pop %v1365
    %v1370 = vrcp.pop %v1366
    %v1371 = vmul.f32 %v1266, %v1367
    %v1372 = vmul.f32 %v1268, %v1368
    %v1373 = vmul.f32 %v1272, %v1369
    %v1374 = vmul.f32 %v1274, %v1370
    %1379 = vrot.lane.b32.xlu0 %v1268, 64
    %v1380 = vpop.permute.xlu0 %1379
    %1381 = vrot.lane.b32.xlu0 %v1343, 64
    %v1382 = vpop.permute.xlu0 %1381
    %1383 = vrot.lane.b32.xlu0 %v1274, 64
    %v1384 = vpop.permute.xlu0 %1383
    %1385 = vrot.lane.b32.xlu0 %v1348, 64
    %v1386 = vpop.permute.xlu0 %1385
    %v1387 = vsel %vm49, %v1380, %v1382
    %v1388 = vsel %vm49, %v1384, %v1386
    %v1393 = vmul.f32 %v1371, %v1387
    %v1394 = vmul.f32 %v1372, %v1382
    %v1395 = vmul.f32 %v1373, %v1388
    %v1396 = vmul.f32 %v1374, %v1386
    %v1397 = vld [vmem:[%s4] sm:$0xff]
    %v1398 = vld [vmem:[%s4 + $0x8] sm:$0xff]
    %v1399 = vld [vmem:[%s4 + $0x10] sm:$0xff]
    %v1400 = vld [vmem:[%s4 + $0x18] sm:$0xff]
    %v1401 = vld [vmem:[%s4 + $0x20] sm:$0xff]
    %v1402 = vld [vmem:[%s4 + $0x28] sm:$0xff]
    %v1403 = vld [vmem:[%s4 + $0x30] sm:$0xff]
    %v1404 = vld [vmem:[%s4 + $0x38] sm:$0xff]
    %v1405 = vld [vmem:[%s4 + $0x40] sm:$0xff]
    %v1406 = vld [vmem:[%s4 + $0x48] sm:$0xff]
    %v1407 = vld [vmem:[%s4 + $0x50] sm:$0xff]
    %v1408 = vld [vmem:[%s4 + $0x58] sm:$0xff]
    %v1409 = vld [vmem:[%s4 + $0x60] sm:$0xff]
    %v1410 = vld [vmem:[%s4 + $0x68] sm:$0xff]
    %v1411 = vld [vmem:[%s4 + $0x70] sm:$0xff]
    %v1412 = vld [vmem:[%s4 + $0x78] sm:$0xff]
    %v1413 = vld [vmem:[%s4 + $0x80] sm:$0xff]
    %v1414 = vld [vmem:[%s4 + $0x88] sm:$0xff]
    %v1415 = vld [vmem:[%s4 + $0x90] sm:$0xff]
    %v1416 = vld [vmem:[%s4 + $0x98] sm:$0xff]
    %v1417 = vld [vmem:[%s4 + $0xa0] sm:$0xff]
    %v1418 = vld [vmem:[%s4 + $0xa8] sm:$0xff]
    %v1419 = vld [vmem:[%s4 + $0xb0] sm:$0xff]
    %v1420 = vld [vmem:[%s4 + $0xb8] sm:$0xff]
    %v1422 = vsel %vm49, %v1394, 0
    %v1425 = vsel %vm49, %v1396, 0
    %1427 = vmatprep.subr.mxu0 0.0
    %1428 = vmatpush1.msra.mxu0 %v1412
    %1429 = vmatprep.subr.mxu0 0.0
    %1430 = vmatpush1.msra.mxu0 %v1411
    %1431 = vmatprep.subr.mxu0 0.0
    %1432 = vmatpush1.msra.mxu0 %v1410
    %1433 = vmatprep.subr.mxu0 0.0
    %1434 = vmatpush1.msra.mxu0 %v1409
    %1435 = vmatprep.subr.mxu0 0.0
    %1436 = vmatpush1.msra.mxu0 %v1408
    %1437 = vmatprep.subr.mxu0 0.0
    %1438 = vmatpush1.msra.mxu0 %v1407
    %1439 = vmatprep.subr.mxu0 0.0
    %1440 = vmatpush1.msra.mxu0 %v1406
    %1441 = vmatprep.subr.mxu0 0.0
    %1442 = vmatpush1.msra.mxu0 %v1405
    %1443 = vmatprep.subr.mxu0 0.0
    %1444 = vmatpush1.msra.mxu0 %v1404
    %1445 = vmatprep.subr.mxu0 0.0
    %1446 = vmatpush1.msra.mxu0 %v1403
    %1447 = vmatprep.subr.mxu0 0.0
    %1448 = vmatpush1.msra.mxu0 %v1402
    %1449 = vmatprep.subr.mxu0 0.0
    %1450 = vmatpush1.msra.mxu0 %v1401
    %1451 = vmatprep.subr.mxu0 0.0
    %1452 = vmatpush1.msra.mxu0 %v1400
    %1453 = vmatprep.subr.mxu0 0.0
    %1454 = vmatpush1.msra.mxu0 %v1399
    %1455 = vmatprep.subr.mxu0 0.0
    %1456 = vmatpush1.msra.mxu0 %v1398
    %1457 = vmatprep.subr.mxu0 0.0
    %1458 = vmatpush1.msra.mxu0 %v1397
    %1459 = vmatprep.subr.mxu0 0.0
    %1460 = vmatpush2.msra.mxu0 0.0
    %1461 = vmatprep.subr.mxu0 0.0
    %1462 = vmatpush2.msra.mxu0 0.0
    %1463 = vmatprep.subr.mxu0 0.0
    %1464 = vmatpush2.msra.mxu0 0.0
    %1465 = vmatprep.subr.mxu0 0.0
    %1466 = vmatpush2.msra.mxu0 0.0
    %1467 = vmatprep.subr.mxu0 0.0
    %1468 = vmatpush2.msra.mxu0 0.0
    %1469 = vmatprep.subr.mxu0 0.0
    %1470 = vmatpush2.msra.mxu0 0.0
    %1471 = vmatprep.subr.mxu0 0.0
    %1472 = vmatpush2.msra.mxu0 0.0
    %1473 = vmatprep.subr.mxu0 0.0
    %1474 = vmatpush2.msra.mxu0 0.0
    %1475 = vmatprep.subr.mxu0 0.0
    %1476 = vmatpush2.msra.mxu0 %v1420
    %1477 = vmatprep.subr.mxu0 0.0
    %1478 = vmatpush2.msra.mxu0 %v1419
    %1479 = vmatprep.subr.mxu0 0.0
    %1480 = vmatpush2.msra.mxu0 %v1418
    %1481 = vmatprep.subr.mxu0 0.0
    %1482 = vmatpush2.msra.mxu0 %v1417
    %1483 = vmatprep.subr.mxu0 0.0
    %1484 = vmatpush2.msra.mxu0 %v1416
    %1485 = vmatprep.subr.mxu0 0.0
    %1486 = vmatpush2.msra.mxu0 %v1415
    %1487 = vmatprep.subr.mxu0 0.0
    %1488 = vmatpush2.msra.mxu0 %v1414
    %1489 = vmatprep.subr.mxu0 0.0
    %1490 = vmatpush2.msra.mxu0 %v1413
    %1491 = vmatprep.mubr.f32.mxu0 %v1422
    %1492 = vmatmul.mubr.f32.gmra.mxu0 %v1393
    %v1493 = vpop.f32.mrf.mxu0
    %v1494 = vadd.f32 0.0, %v1493
    %v1495 = vpop.f32.mrf.mxu0
    %1496 = vmatprep.mubr.f32.mxu0 %v1425
    %1497 = vmatmul.mubr.f32.gmra.mxu0 %v1395
    %v1498 = vpop.f32.mrf.mxu0
    %v1499 = vadd.f32 0.0, %v1498
    %v1500 = vpop.f32.mrf.mxu0
    %1501 = vdwg.mxu0
    %v1502 = vadd.f32 %v1151, %v1494
    %v1503 = vadd.f32 %v1152, %v1499
    %1504 = vst.msk [vmem:[#allocation5] sm:$0xff] %vm49, %v1502
    %1505 = vst.msk [vmem:[#allocation5 + $0x8] sm:$0xff] %vm49, %v1503
    // Predicated region
    $region30: #{encoder_block_forward.1} parent=1 // pred_check
      _
    $region31: #{encoder_block_forward.1} parent=1 // pred_check_branch
      %1507 = sbr.rel (0) target = $region33
    $region32: #{encoder_block_forward.1} parent=1 // pred_region
      %s1509 = ssub.s32 256, 256
      %1510 = vsyncadd [#allocation4], %s1509
      %s1511 = sshll.u32 [#allocation5], 4
      %s1512 = int_to_ptr.vmem [resolvable:$true] %s1511
      %1517 = dma.vmem_to_hbm [thread:$0]  %s1512, 256, %s6, [#allocation4], 128, 128, 8
    $region33: #{encoder_block_forward.1} parent=1 // pred_fallthru
      _
    // Predicated region
    $region34: #{encoder_block_forward.1} parent=1 // pred_check
      _
    $region35: #{encoder_block_forward.1} parent=1 // pred_check_branch
      %1519 = sbr.rel (0) target = $region37
    $region36: #{encoder_block_forward.1} parent=1 // pred_region
      %1520 = dma.done [#allocation4], 256
    $region37: #{encoder_block_forward.1} parent=1 // pred_fallthru
      _
    %1521 = vsyncpa [#allocation3], 1
    %1522 = vsyncpa [#allocation4], 1

</llo_original>
